<compile_context>
chip_gen: v7x
topology: tpu7x:2x2x1
jax: 0.10.0
libtpu: 0.0.40
codegen_flags: <defaults>
</compile_context>

<pallas_src>
import functools

import numpy as np
import jax
import jax.numpy as jnp
from jax import lax
from jax.experimental import pallas as pl
from jax.experimental.pallas import tpu as pltpu


_SIGMOID_1 = 0.7310585786300049  # sigmoid(1.0): MaskVector weight at init (eval path)


# ------------------------------- fused kernel -------------------------------

def _gnn_fused_kernel(*refs, num_layers, acts, n_classes):
    # ref layout:
    #   [scal(SMEM), a, inv_deg, r, x,
    #    w_0, b_0, ..., w_{L-1}, b_{L-1},
    #    ws1, bs1, ws2, bs2, ws3, bs3,
    #    noise_out, noisesub, sm_out, smsub, pro_out]
    scal_ref, a_ref, inv_deg_ref, r_ref, x_ref = refs[:5]
    pos = 5
    layer_refs = [(refs[pos + 2 * l], refs[pos + 2 * l + 1]) for l in range(num_layers)]
    pos += 2 * num_layers
    ws1_ref, bs1_ref, ws2_ref, bs2_ref, ws3_ref, bs3_ref = refs[pos:pos + 6]
    pos += 6
    noise_out_ref, noisesub_ref, sm_out_ref, smsub_ref, pro_out_ref = refs[pos:pos + 5]

    f32 = jnp.float32
    a = a_ref[...]                       # (N, N) 0/1, bf16 (exact)
    inv_deg = inv_deg_ref[...]           # (N, 1) 1/in_deg (clamped)
    x = x_ref[...]                       # (N, IN_PAD) raw features (lane-padded f32)
    inv_hop = scal_ref[0]                # scalar 1/len(hop) (clamped)
    has_hop = scal_ref[1]                # scalar 1.0 iff len(hop) > 0
    r0 = scal_ref[2]                     # scalar r[0] (is node 0 a 1-hop neighbour?)

    def agg_t(z):
        # (A^T @ z) on the MXU: contract the leading (source-node) axis of both.
        # bf16 operands, f32 accumulation.
        return lax.dot_general(a, z.astype(a.dtype),
                               (((0,), (0,)), ((), ())),
                               preferred_element_type=f32)

    # ---- GNN layers (MeanAggregator + Linear (+relu)); dropout = identity ----
    h = x
    for l in range(num_layers):
        w = layer_refs[l][0][...]        # (IN_PAD_l, OUT_PAD_l)
        b = layer_refs[l][1][...]        # (1, OUT_PAD_l)
        f_in_p, f_out_p = w.shape        # padded widths (static) -> pick matmul order
        if f_out_p <= f_in_p:            # shrink lanes before the NxN contraction
            hw = jnp.dot(h, w, preferred_element_type=f32)
            h = (agg_t(hw) + hw) * inv_deg + b
        else:
            agg = (agg_t(h) + h) * inv_deg
            h = jnp.dot(agg, w, preferred_element_type=f32) + b
        if acts[l]:
            h = jnp.maximum(h, 0.0)
    # NOTE: the reference Aggregator also computes a `norm` tensor it never
    # uses (dead code) -> intentionally omitted.

    noise0 = h                           # post-GNN features (N, LC)

    # ---- masked log_softmax over the first n_classes lanes (rest padded) ----
    def mls(v):
        col = lax.broadcasted_iota(jnp.int32, v.shape, v.ndim - 1)
        cm = col < n_classes
        vm = jnp.where(cm, v, -1e30)
        m = jnp.max(vm, axis=-1, keepdims=True)
        s = jnp.sum(jnp.exp(vm - m), axis=-1, keepdims=True)
        return jnp.where(cm, v - m - jnp.log(s), 0.0)

    # All five outputs equal noise0 / log_softmax(noise0) except (maybe) row 0.
    ls0 = mls(noise0)                    # ONE full-array log-softmax, shared
    noise_out_ref[...] = ls0
    noisesub_ref[...] = noise0
    sm_out_ref[...] = ls0
    smsub_ref[...] = noise0
    pro_out_ref[...] = ls0

    @pl.when(has_hop > 0.5)
    def _():
        r = r_ref[...]                                          # (1, N)
        row0_old = noise0[0:1, :]
        s0 = jnp.dot(r, noise0, preferred_element_type=f32)     # (1, LC)
        new_row = s0 * inv_hop                                  # hop-mean -> noisesub[0]
        # r @ (noisesub after the row-0 patch) via a rank-1 correction:
        s1 = s0 + r0 * (new_row - row0_old)
        smooth = s1 * (inv_hop * _SIGMOID_1)                    # MaskVector smoothing

        # SubG proxy MLP on the MaskVector-weighted mean of the raw features.
        proxy_in = jnp.dot(r, x, preferred_element_type=f32) * (inv_hop * _SIGMOID_1)
        ph = jnp.maximum(jnp.dot(proxy_in, ws1_ref[...], preferred_element_type=f32)
                         + bs1_ref[...], 0.0)
        ph = jnp.maximum(jnp.dot(ph, ws2_ref[...], preferred_element_type=f32)
                         + bs2_ref[...], 0.0)
        proxy = jnp.dot(ph, ws3_ref[...], preferred_element_type=f32) + bs3_ref[...]

        # NaN guards (keep old row on NaN), applied only to the (1, LC) rows.
        sm_bad = jnp.max(jnp.isnan(smooth).astype(f32), axis=-1, keepdims=True)
        pr_bad = jnp.max(jnp.isnan(proxy).astype(f32), axis=-1, keepdims=True)
        sm_row = jnp.where(sm_bad < 0.5, smooth, row0_old)
        pr_row = jnp.where(pr_bad < 0.5, proxy, row0_old)

        # Row-0 patches (the reference only ever rewrites index 0 of each tensor).
        noisesub_ref[0:1, :] = new_row
        smsub_ref[0:1, :] = sm_row
        noise_out_ref[0:1, :] = mls(new_row)
        sm_out_ref[0:1, :] = mls(sm_row)
        pro_out_ref[0:1, :] = mls(pr_row)


# ------------------------------- jitted wrapper ------------------------------

@functools.partial(jax.jit, static_argnames=("acts",))
def _gnn_forward_jit(features, adj, train_idx, weights, biases, subg_params, acts):
    n, in_feats = features.shape
    num_layers = len(weights)
    layer_dims = tuple((int(w.shape[0]), int(w.shape[1])) for w in weights)
    n_classes = layer_dims[-1][1]

    def pad_to(v):
        return max(128, -(-v // 128) * 128)

    in_pad = pad_to(in_feats)
    out_pads = tuple(pad_to(fo) for (_, fo) in layer_dims)   # per-layer widths
    lc = out_pads[-1]                                        # padded n_classes

    # graph preprocessing: tiny fused XLA ops, no host sync, no N^2 transpose pass
    a_bin = (adj != 0).astype(jnp.float32)              # adjtemp[adjtemp != 0] = 1
    in_deg = jnp.sum(a_bin, axis=0).reshape(n, 1)        # DGL in_degrees
    # TODO(synk): original divides by the raw in-degree (inf/nan for isolated
    # nodes); we clamp to >=1 for a safe reciprocal.
    inv_deg = 1.0 / jnp.maximum(in_deg, 1.0)
    a_bf16 = a_bin.astype(jnp.bfloat16)                  # exact for 0/1 values

    # The reference `return` sits inside the train_idx loop -> only idx == 0 runs,
    # and it overwrites row index 0 (not row `node`) of the feature tensors.
    node = train_idx[0]
    # findNhopNodes(adj, node, 1) == nonzeros of adj[node] excluding node itself
    r = a_bin[node] * (jnp.arange(n) != node).astype(jnp.float32)
    r = r.reshape(1, n)
    hop_cnt = jnp.sum(r)
    inv_hop = 1.0 / jnp.maximum(hop_cnt, 1.0)
    has_hop = (hop_cnt > 0).astype(jnp.float32)
    scal = jnp.stack([inv_hop, has_hop, r[0, 0]])        # (3,) scalars -> SMEM

    def pad2(m, rows, cols):
        out = jnp.zeros((rows, cols), jnp.float32)
        return out.at[: m.shape[0], : m.shape[1]].set(m.astype(jnp.float32))

    x_pad = pad2(features, n, in_pad)

    layer_ops = []
    cur_in = in_pad
    for l, (w, b) in enumerate(zip(weights, biases)):
        layer_ops += [pad2(w, cur_in, out_pads[l]),
                      pad2(b.reshape(1, -1), 1, out_pads[l])]
        cur_in = out_pads[l]

    ws1, bs1, ws2, bs2, ws3, bs3 = subg_params
    h5 = pad_to(int(ws1.shape[1]))
    subg_ops = [pad2(ws1, in_pad, h5), pad2(bs1.reshape(1, -1), 1, h5),
                pad2(ws2, h5, lc), pad2(bs2.reshape(1, -1), 1, lc),
                pad2(ws3, lc, lc), pad2(bs3.reshape(1, -1), 1, lc)]

    operands = [scal, a_bf16, inv_deg, r, x_pad] + layer_ops + subg_ops

    def vspec(shape):
        return pl.BlockSpec(tuple(shape), lambda i: (0,) * len(shape))

    in_specs = ([pl.BlockSpec(memory_space=pltpu.MemorySpace.SMEM)]
                + [vspec(op.shape) for op in operands[1:]])
    out_specs = tuple(vspec((n, lc)) for _ in range(5))
    out_shape = tuple(jax.ShapeDtypeStruct((n, lc), jnp.float32) for _ in range(5))

    kernel = functools.partial(_gnn_fused_kernel, num_layers=num_layers,
                               acts=acts, n_classes=n_classes)

    # TODO(synk): for large graphs (N >~ 2-4k) the dense (N, N) adjacency must be
    # row-tiled with a reduction-axis grid + VMEM accumulator (and the layers
    # split into separate passes, since layer l+1 needs all rows of layer l);
    # at this scale a single whole-array block fits VMEM and is fastest.
    outs = pl.pallas_call(
        kernel,
        out_shape=out_shape,
        grid=(1,),
        in_specs=in_specs,
        out_specs=out_specs,
        compiler_params=pltpu.CompilerParams(
            dimension_semantics=("arbitrary",),
            vmem_limit_bytes=64 * 1024 * 1024),
    )(*operands)

    noise_out, noisesub, sm_out, smsub, pro_out = outs
    c = n_classes
    return (noise_out[:, :c], noisesub[:, :c], sm_out[:, :c],
            smsub[:, :c], pro_out[:, :c])


def gnn_forward(features, adj, train_labels, train_idx, layer_params, subg_params,
                notevaluate_flag=False):
    # TODO(synk): the in-forward SGD training of MaskVector / SubG only runs
    # when notevaluateFlag=True; this implementation covers the eval path only.
    del train_labels, notevaluate_flag
    weights = tuple(w for (w, b, a) in layer_params)
    biases = tuple(b for (w, b, a) in layer_params)
    acts = tuple(bool(a) for (w, b, a) in layer_params)
    return _gnn_forward_jit(jnp.asarray(features, jnp.float32),
                            jnp.asarray(adj, jnp.float32),
                            jnp.asarray(train_idx, jnp.int32),
                            weights, biases, tuple(subg_params), acts)


# ------------------------------ parameter init -------------------------------

def xavier_uniform_relu(key, fan_in, fan_out):
    gain = float(np.sqrt(2.0))                      # calculate_gain('relu')
    bound = gain * float(np.sqrt(6.0 / (fan_in + fan_out)))
    return jax.random.uniform(key, (fan_in, fan_out), jnp.float32, -bound, bound)


def linear_default(key, fan_in, fan_out):
    k1, k2 = jax.random.split(key)
    b = 1.0 / float(np.sqrt(fan_in))
    w = jax.random.uniform(k1, (fan_in, fan_out), jnp.float32, -b, b)
    bias = jax.random.uniform(k2, (1, fan_out), jnp.float32, -b, b)
    return w, bias


if __name__ == "__main__":
    key = jax.random.PRNGKey(0)
    N, in_feats, n_hidden, n_classes, n_layers = 32, 16, 32, 2, 2
    k_feat, k_adj, k_params, k_labels = jax.random.split(key, 4)

    features = jax.random.normal(k_feat, (N, in_feats), dtype=jnp.float32)

    # symmetric adjacency: random edges + ring (in-degree >= 2), no self loops
    rand = np.asarray(jax.random.bernoulli(k_adj, 0.15, (N, N)), dtype=np.float32)
    adj_np = np.maximum(rand, rand.T)
    for i in range(N):
        adj_np[i, (i + 1) % N] = 1.0
        adj_np[(i + 1) % N, i] = 1.0
    np.fill_diagonal(adj_np, 0.0)
    adj = jnp.asarray(adj_np)

    # GNN layers: (in->hid, relu), (hid->hid, relu) x (n_layers-1), (hid->classes, None)
    dims = ([(in_feats, n_hidden, True)]
            + [(n_hidden, n_hidden, True)] * (n_layers - 1)
            + [(n_hidden, n_classes, False)])
    layer_params = []
    kp = k_params
    for (fi, fo, act) in dims:
        kp, kw, kb = jax.random.split(kp, 3)
        w = xavier_uniform_relu(kw, fi, fo)
        bnd = 1.0 / float(np.sqrt(fi))
        b = jax.random.uniform(kb, (1, fo), jnp.float32, -bnd, bnd)
        layer_params.append((w, b, act))

    # SubG(in_feats, 5, 2): encoder1, decoder1, fw
    kp, ks1, ks2, ks3 = jax.random.split(kp, 4)
    w1, b1 = linear_default(ks1, in_feats, 5)
    w2, b2 = linear_default(ks2, 5, n_classes)
    w3, b3 = linear_default(ks3, n_classes, n_classes)
    subg_params = (w1, b1, w2, b2, w3, b3)

    train_idx = np.array([3, 7, 11, 20], dtype=np.int32)
    train_labels = jax.random.randint(k_labels, (len(train_idx),), 0, n_classes)

    outs = gnn_forward(features, adj, train_labels, train_idx,
                       layer_params, subg_params, notevaluate_flag=False)
    jax.block_until_ready(outs)
    print("KERNEL_OK")
</pallas_src>

<mosaic_0001>
module attributes {stable_mosaic.version = 11 : i64} {
  func.func @_gnn_fused_kernel(%arg0: i32, %arg1: memref<3xf32, #tpu.memory_space<smem>>, %arg2: memref<32x32xbf16, #tpu.memory_space<vmem>>, %arg3: memref<32x1xf32, #tpu.memory_space<vmem>>, %arg4: memref<1x32xf32, #tpu.memory_space<vmem>>, %arg5: memref<32x128xf32, #tpu.memory_space<vmem>>, %arg6: memref<128x128xf32, #tpu.memory_space<vmem>>, %arg7: memref<1x128xf32, #tpu.memory_space<vmem>>, %arg8: memref<128x128xf32, #tpu.memory_space<vmem>>, %arg9: memref<1x128xf32, #tpu.memory_space<vmem>>, %arg10: memref<128x128xf32, #tpu.memory_space<vmem>>, %arg11: memref<1x128xf32, #tpu.memory_space<vmem>>, %arg12: memref<128x128xf32, #tpu.memory_space<vmem>>, %arg13: memref<1x128xf32, #tpu.memory_space<vmem>>, %arg14: memref<128x128xf32, #tpu.memory_space<vmem>>, %arg15: memref<1x128xf32, #tpu.memory_space<vmem>>, %arg16: memref<128x128xf32, #tpu.memory_space<vmem>>, %arg17: memref<1x128xf32, #tpu.memory_space<vmem>>, %arg18: memref<32x128xf32, #tpu.memory_space<vmem>>, %arg19: memref<32x128xf32, #tpu.memory_space<vmem>>, %arg20: memref<32x128xf32, #tpu.memory_space<vmem>>, %arg21: memref<32x128xf32, #tpu.memory_space<vmem>>, %arg22: memref<32x128xf32, #tpu.memory_space<vmem>>) attributes {dimension_semantics = [#tpu.dimension_semantics<arbitrary>], iteration_bounds = array<i64: 1>, scalar_prefetch = 0 : i64, scratch_operands = 0 : i64, tpu.core_type = #tpu.core_type<tc>, window_params = [{transform_indices = @transform_0, window_bounds = array<i64: 3>}, {pipeline_mode = #tpu.pipeline_mode<synchronous>, transform_indices = @transform_1, window_bounds = array<i64: 32, 32>}, {pipeline_mode = #tpu.pipeline_mode<synchronous>, transform_indices = @transform_2, window_bounds = array<i64: 32, 1>}, {pipeline_mode = #tpu.pipeline_mode<synchronous>, transform_indices = @transform_3, window_bounds = array<i64: 1, 32>}, {pipeline_mode = #tpu.pipeline_mode<synchronous>, transform_indices = @transform_4, window_bounds = array<i64: 32, 128>}, {pipeline_mode = #tpu.pipeline_mode<synchronous>, transform_indices = @transform_5, window_bounds = array<i64: 128, 128>}, {pipeline_mode = #tpu.pipeline_mode<synchronous>, transform_indices = @transform_6, window_bounds = array<i64: 1, 128>}, {pipeline_mode = #tpu.pipeline_mode<synchronous>, transform_indices = @transform_7, window_bounds = array<i64: 128, 128>}, {pipeline_mode = #tpu.pipeline_mode<synchronous>, transform_indices = @transform_8, window_bounds = array<i64: 1, 128>}, {pipeline_mode = #tpu.pipeline_mode<synchronous>, transform_indices = @transform_9, window_bounds = array<i64: 128, 128>}, {pipeline_mode = #tpu.pipeline_mode<synchronous>, transform_indices = @transform_10, window_bounds = array<i64: 1, 128>}, {pipeline_mode = #tpu.pipeline_mode<synchronous>, transform_indices = @transform_11, window_bounds = array<i64: 128, 128>}, {pipeline_mode = #tpu.pipeline_mode<synchronous>, transform_indices = @transform_12, window_bounds = array<i64: 1, 128>}, {pipeline_mode = #tpu.pipeline_mode<synchronous>, transform_indices = @transform_13, window_bounds = array<i64: 128, 128>}, {pipeline_mode = #tpu.pipeline_mode<synchronous>, transform_indices = @transform_14, window_bounds = array<i64: 1, 128>}, {pipeline_mode = #tpu.pipeline_mode<synchronous>, transform_indices = @transform_15, window_bounds = array<i64: 128, 128>}, {pipeline_mode = #tpu.pipeline_mode<synchronous>, transform_indices = @transform_16, window_bounds = array<i64: 1, 128>}, {pipeline_mode = #tpu.pipeline_mode<synchronous>, transform_indices = @transform_17, window_bounds = array<i64: 32, 128>}, {pipeline_mode = #tpu.pipeline_mode<synchronous>, transform_indices = @transform_18, window_bounds = array<i64: 32, 128>}, {pipeline_mode = #tpu.pipeline_mode<synchronous>, transform_indices = @transform_19, window_bounds = array<i64: 32, 128>}, {pipeline_mode = #tpu.pipeline_mode<synchronous>, transform_indices = @transform_20, window_bounds = array<i64: 32, 128>}, {pipeline_mode = #tpu.pipeline_mode<synchronous>, transform_indices = @transform_21, window_bounds = array<i64: 32, 128>}]} {
    %c0 = arith.constant 0 : index
    %c0_0 = arith.constant 0 : index
    %0 = vector.load %arg2[%c0, %c0_0] : memref<32x32xbf16, #tpu.memory_space<vmem>>, vector<32x32xbf16>
    %c0_1 = arith.constant 0 : index
    %c0_2 = arith.constant 0 : index
    %1 = vector.load %arg3[%c0_1, %c0_2] : memref<32x1xf32, #tpu.memory_space<vmem>>, vector<32x1xf32>
    %c0_3 = arith.constant 0 : index
    %c0_4 = arith.constant 0 : index
    %2 = vector.load %arg5[%c0_3, %c0_4] : memref<32x128xf32, #tpu.memory_space<vmem>>, vector<32x128xf32>
    %c0_5 = arith.constant 0 : index
    %3 = memref.load %arg1[%c0_5] : memref<3xf32, #tpu.memory_space<smem>>
    %c1 = arith.constant 1 : index
    %4 = memref.load %arg1[%c1] : memref<3xf32, #tpu.memory_space<smem>>
    %c2 = arith.constant 2 : index
    %5 = memref.load %arg1[%c2] : memref<3xf32, #tpu.memory_space<smem>>
    %c0_6 = arith.constant 0 : index
    %c0_7 = arith.constant 0 : index
    %6 = vector.load %arg6[%c0_6, %c0_7] : memref<128x128xf32, #tpu.memory_space<vmem>>, vector<128x128xf32>
    %c0_8 = arith.constant 0 : index
    %c0_9 = arith.constant 0 : index
    %7 = vector.load %arg7[%c0_8, %c0_9] : memref<1x128xf32, #tpu.memory_space<vmem>>, vector<1x128xf32>
    %cst = arith.constant dense<0.000000e+00> : vector<32x128xf32>
    %8 = tpu.matmul %2, %6, %cst {dimension_numbers = #tpu.dot_dimension_numbers<[1], [0], [0], [1], [0, 0, 1, 1], [], []>} : vector<32x128xf32>, vector<128x128xf32>, vector<32x128xf32> -> vector<32x128xf32>
    %9 = arith.truncf %8 : vector<32x128xf32> to vector<32x128xbf16>
    %cst_10 = arith.constant dense<0.000000e+00> : vector<32x128xf32>
    %10 = tpu.matmul %0, %9, %cst_10 {dimension_numbers = #tpu.dot_dimension_numbers<[0], [0], [1], [1], [0, 1, 1, 1], [], []>} : vector<32x32xbf16>, vector<32x128xbf16>, vector<32x128xf32> -> vector<32x128xf32>
    %11 = arith.addf %10, %8 : vector<32x128xf32>
    %12 = vector.broadcast %1 : vector<32x1xf32> to vector<32x128xf32>
    %13 = arith.mulf %11, %12 : vector<32x128xf32>
    %14 = vector.broadcast %7 : vector<1x128xf32> to vector<32x128xf32>
    %15 = arith.addf %13, %14 : vector<32x128xf32>
    %cst_11 = arith.constant 0.000000e+00 : f32
    %16 = vector.broadcast %cst_11 : f32 to vector<32x128xf32>
    %17 = arith.maximumf %15, %16 : vector<32x128xf32>
    %c0_12 = arith.constant 0 : index
    %c0_13 = arith.constant 0 : index
    %18 = vector.load %arg8[%c0_12, %c0_13] : memref<128x128xf32, #tpu.memory_space<vmem>>, vector<128x128xf32>
    %c0_14 = arith.constant 0 : index
    %c0_15 = arith.constant 0 : index
    %19 = vector.load %arg9[%c0_14, %c0_15] : memref<1x128xf32, #tpu.memory_space<vmem>>, vector<1x128xf32>
    %cst_16 = arith.constant dense<0.000000e+00> : vector<32x128xf32>
    %20 = tpu.matmul %17, %18, %cst_16 {dimension_numbers = #tpu.dot_dimension_numbers<[1], [0], [0], [1], [0, 0, 1, 1], [], []>} : vector<32x128xf32>, vector<128x128xf32>, vector<32x128xf32> -> vector<32x128xf32>
    %21 = arith.truncf %20 : vector<32x128xf32> to vector<32x128xbf16>
    %cst_17 = arith.constant dense<0.000000e+00> : vector<32x128xf32>
    %22 = tpu.matmul %0, %21, %cst_17 {dimension_numbers = #tpu.dot_dimension_numbers<[0], [0], [1], [1], [0, 1, 1, 1], [], []>} : vector<32x32xbf16>, vector<32x128xbf16>, vector<32x128xf32> -> vector<32x128xf32>
    %23 = arith.addf %22, %20 : vector<32x128xf32>
    %24 = vector.broadcast %1 : vector<32x1xf32> to vector<32x128xf32>
    %25 = arith.mulf %23, %24 : vector<32x128xf32>
    %26 = vector.broadcast %19 : vector<1x128xf32> to vector<32x128xf32>
    %27 = arith.addf %25, %26 : vector<32x128xf32>
    %cst_18 = arith.constant 0.000000e+00 : f32
    %28 = vector.broadcast %cst_18 : f32 to vector<32x128xf32>
    %29 = arith.maximumf %27, %28 : vector<32x128xf32>
    %c0_19 = arith.constant 0 : index
    %c0_20 = arith.constant 0 : index
    %30 = vector.load %arg10[%c0_19, %c0_20] : memref<128x128xf32, #tpu.memory_space<vmem>>, vector<128x128xf32>
    %c0_21 = arith.constant 0 : index
    %c0_22 = arith.constant 0 : index
    %31 = vector.load %arg11[%c0_21, %c0_22] : memref<1x128xf32, #tpu.memory_space<vmem>>, vector<1x128xf32>
    %cst_23 = arith.constant dense<0.000000e+00> : vector<32x128xf32>
    %32 = tpu.matmul %29, %30, %cst_23 {dimension_numbers = #tpu.dot_dimension_numbers<[1], [0], [0], [1], [0, 0, 1, 1], [], []>} : vector<32x128xf32>, vector<128x128xf32>, vector<32x128xf32> -> vector<32x128xf32>
    %33 = arith.truncf %32 : vector<32x128xf32> to vector<32x128xbf16>
    %cst_24 = arith.constant dense<0.000000e+00> : vector<32x128xf32>
    %34 = tpu.matmul %0, %33, %cst_24 {dimension_numbers = #tpu.dot_dimension_numbers<[0], [0], [1], [1], [0, 1, 1, 1], [], []>} : vector<32x32xbf16>, vector<32x128xbf16>, vector<32x128xf32> -> vector<32x128xf32>
    %35 = arith.addf %34, %32 : vector<32x128xf32>
    %36 = vector.broadcast %1 : vector<32x1xf32> to vector<32x128xf32>
    %37 = arith.mulf %35, %36 : vector<32x128xf32>
    %38 = vector.broadcast %31 : vector<1x128xf32> to vector<32x128xf32>
    %39 = arith.addf %37, %38 : vector<32x128xf32>
    %40 = tpu.iota {dimensions = array<i32: 1>} : vector<32x128xi32>
    %c2_i32 = arith.constant 2 : i32
    %41 = vector.broadcast %c2_i32 : i32 to vector<32x128xi32>
    %42 = arith.cmpi slt, %40, %41 : vector<32x128xi32>
    %cst_25 = arith.constant -1.000000e+30 : f32
    %43 = vector.broadcast %cst_25 : f32 to vector<32x128xf32>
    %44 = arith.select %42, %39, %43 : vector<32x128xi1>, vector<32x128xf32>
    %cst_26 = arith.constant dense<0xFF800000> : vector<32xf32>
    %45 = vector.multi_reduction <maximumf>, %44, %cst_26 [1] : vector<32x128xf32> to vector<32xf32>
    %46 = vector.shape_cast %45 : vector<32xf32> to vector<32x1xf32>
    %47 = vector.broadcast %46 : vector<32x1xf32> to vector<32x128xf32>
    %48 = arith.subf %44, %47 : vector<32x128xf32>
    %49 = math.exp %48 : vector<32x128xf32>
    %cst_27 = arith.constant dense<0.000000e+00> : vector<32xf32>
    %50 = vector.multi_reduction <add>, %49, %cst_27 [1] : vector<32x128xf32> to vector<32xf32>
    %51 = vector.shape_cast %50 : vector<32xf32> to vector<32x1xf32>
    %52 = vector.broadcast %46 : vector<32x1xf32> to vector<32x128xf32>
    %53 = arith.subf %39, %52 : vector<32x128xf32>
    %54 = math.log %51 : vector<32x1xf32>
    %55 = vector.broadcast %54 : vector<32x1xf32> to vector<32x128xf32>
    %56 = arith.subf %53, %55 : vector<32x128xf32>
    %cst_28 = arith.constant 0.000000e+00 : f32
    %57 = vector.broadcast %cst_28 : f32 to vector<32x128xf32>
    %58 = arith.select %42, %56, %57 : vector<32x128xi1>, vector<32x128xf32>
    %c0_29 = arith.constant 0 : index
    %c0_30 = arith.constant 0 : index
    %59 = vector.load %arg18[%c0_29, %c0_30] : memref<32x128xf32, #tpu.memory_space<vmem>>, vector<32x128xf32>
    tpu.vector_store %arg18[%c0_29, %c0_30], %58 {strides = array<i32>} : memref<32x128xf32, #tpu.memory_space<vmem>>, vector<32x128xf32>,
    %c0_31 = arith.constant 0 : index
    %c0_32 = arith.constant 0 : index
    %60 = vector.load %arg19[%c0_31, %c0_32] : memref<32x128xf32, #tpu.memory_space<vmem>>, vector<32x128xf32>
    tpu.vector_store %arg19[%c0_31, %c0_32], %39 {strides = array<i32>} : memref<32x128xf32, #tpu.memory_space<vmem>>, vector<32x128xf32>,
    %c0_33 = arith.constant 0 : index
    %c0_34 = arith.constant 0 : index
    %61 = vector.load %arg20[%c0_33, %c0_34] : memref<32x128xf32, #tpu.memory_space<vmem>>, vector<32x128xf32>
    tpu.vector_store %arg20[%c0_33, %c0_34], %58 {strides = array<i32>} : memref<32x128xf32, #tpu.memory_space<vmem>>, vector<32x128xf32>,
    %c0_35 = arith.constant 0 : index
    %c0_36 = arith.constant 0 : index
    %62 = vector.load %arg21[%c0_35, %c0_36] : memref<32x128xf32, #tpu.memory_space<vmem>>, vector<32x128xf32>
    tpu.vector_store %arg21[%c0_35, %c0_36], %39 {strides = array<i32>} : memref<32x128xf32, #tpu.memory_space<vmem>>, vector<32x128xf32>,
    %c0_37 = arith.constant 0 : index
    %c0_38 = arith.constant 0 : index
    %63 = vector.load %arg22[%c0_37, %c0_38] : memref<32x128xf32, #tpu.memory_space<vmem>>, vector<32x128xf32>
    tpu.vector_store %arg22[%c0_37, %c0_38], %58 {strides = array<i32>} : memref<32x128xf32, #tpu.memory_space<vmem>>, vector<32x128xf32>,
    %cst_39 = arith.constant 5.000000e-01 : f32
    %64 = arith.cmpf ogt, %4, %cst_39 : f32
    %65 = arith.extui %64 : i1 to i32
    %c0_i32 = arith.constant 0 : i32
    %66 = arith.cmpi ne, %65, %c0_i32 : i32
    scf.if %66 {
      %c0_40 = arith.constant 0 : index
      %c0_41 = arith.constant 0 : index
      %67 = vector.load %arg4[%c0_40, %c0_41] : memref<1x32xf32, #tpu.memory_space<vmem>>, vector<1x32xf32>
      %68 = vector.extract_strided_slice %39 {offsets = [0, 0], sizes = [1, 128], strides = [1, 1]} : vector<32x128xf32> to vector<1x128xf32>
      %cst_42 = arith.constant dense<0.000000e+00> : vector<1x128xf32>
      %69 = tpu.matmul %67, %39, %cst_42 {dimension_numbers = #tpu.dot_dimension_numbers<[1], [0], [0], [1], [0, 0, 1, 1], [], []>} : vector<1x32xf32>, vector<32x128xf32>, vector<1x128xf32> -> vector<1x128xf32>
      %70 = vector.broadcast %3 : f32 to vector<1x128xf32>
      %71 = arith.mulf %69, %70 : vector<1x128xf32>
      %72 = arith.subf %71, %68 : vector<1x128xf32>
      %73 = vector.broadcast %5 : f32 to vector<1x128xf32>
      %74 = arith.mulf %73, %72 : vector<1x128xf32>
      %75 = arith.addf %69, %74 : vector<1x128xf32>
      %cst_43 = arith.constant 0.731058597 : f32
      %76 = arith.mulf %3, %cst_43 : f32
      %77 = vector.broadcast %76 : f32 to vector<1x128xf32>
      %78 = arith.mulf %75, %77 : vector<1x128xf32>
      %cst_44 = arith.constant dense<0.000000e+00> : vector<1x128xf32>
      %79 = tpu.matmul %67, %2, %cst_44 {dimension_numbers = #tpu.dot_dimension_numbers<[1], [0], [0], [1], [0, 0, 1, 1], [], []>} : vector<1x32xf32>, vector<32x128xf32>, vector<1x128xf32> -> vector<1x128xf32>
      %cst_45 = arith.constant 0.731058597 : f32
      %80 = arith.mulf %3, %cst_45 : f32
      %81 = vector.broadcast %80 : f32 to vector<1x128xf32>
      %82 = arith.mulf %79, %81 : vector<1x128xf32>
      %c0_46 = arith.constant 0 : index
      %c0_47 = arith.constant 0 : index
      %83 = vector.load %arg12[%c0_46, %c0_47] : memref<128x128xf32, #tpu.memory_space<vmem>>, vector<128x128xf32>
      %cst_48 = arith.constant dense<0.000000e+00> : vector<1x128xf32>
      %84 = tpu.matmul %82, %83, %cst_48 {dimension_numbers = #tpu.dot_dimension_numbers<[1], [0], [0], [1], [0, 0, 1, 1], [], []>} : vector<1x128xf32>, vector<128x128xf32>, vector<1x128xf32> -> vector<1x128xf32>
      %c0_49 = arith.constant 0 : index
      %c0_50 = arith.constant 0 : index
      %85 = vector.load %arg13[%c0_49, %c0_50] : memref<1x128xf32, #tpu.memory_space<vmem>>, vector<1x128xf32>
      %86 = arith.addf %84, %85 : vector<1x128xf32>
      %cst_51 = arith.constant 0.000000e+00 : f32
      %87 = vector.broadcast %cst_51 : f32 to vector<1x128xf32>
      %88 = arith.maximumf %86, %87 : vector<1x128xf32>
      %c0_52 = arith.constant 0 : index
      %c0_53 = arith.constant 0 : index
      %89 = vector.load %arg14[%c0_52, %c0_53] : memref<128x128xf32, #tpu.memory_space<vmem>>, vector<128x128xf32>
      %cst_54 = arith.constant dense<0.000000e+00> : vector<1x128xf32>
      %90 = tpu.matmul %88, %89, %cst_54 {dimension_numbers = #tpu.dot_dimension_numbers<[1], [0], [0], [1], [0, 0, 1, 1], [], []>} : vector<1x128xf32>, vector<128x128xf32>, vector<1x128xf32> -> vector<1x128xf32>
      %c0_55 = arith.constant 0 : index
      %c0_56 = arith.constant 0 : index
      %91 = vector.load %arg15[%c0_55, %c0_56] : memref<1x128xf32, #tpu.memory_space<vmem>>, vector<1x128xf32>
      %92 = arith.addf %90, %91 : vector<1x128xf32>
      %cst_57 = arith.constant 0.000000e+00 : f32
      %93 = vector.broadcast %cst_57 : f32 to vector<1x128xf32>
      %94 = arith.maximumf %92, %93 : vector<1x128xf32>
      %c0_58 = arith.constant 0 : index
      %c0_59 = arith.constant 0 : index
      %95 = vector.load %arg16[%c0_58, %c0_59] : memref<128x128xf32, #tpu.memory_space<vmem>>, vector<128x128xf32>
      %cst_60 = arith.constant dense<0.000000e+00> : vector<1x128xf32>
      %96 = tpu.matmul %94, %95, %cst_60 {dimension_numbers = #tpu.dot_dimension_numbers<[1], [0], [0], [1], [0, 0, 1, 1], [], []>} : vector<1x128xf32>, vector<128x128xf32>, vector<1x128xf32> -> vector<1x128xf32>
      %c0_61 = arith.constant 0 : index
      %c0_62 = arith.constant 0 : index
      %97 = vector.load %arg17[%c0_61, %c0_62] : memref<1x128xf32, #tpu.memory_space<vmem>>, vector<1x128xf32>
      %98 = arith.addf %96, %97 : vector<1x128xf32>
      %99 = arith.cmpf one, %78, %78 : vector<1x128xf32>
      %100 = arith.extui %99 : vector<1x128xi1> to vector<1x128xi32>
      %101 = arith.sitofp %100 : vector<1x128xi32> to vector<1x128xf32>
      %cst_63 = arith.constant dense<0xFF800000> : vector<1xf32>
      %102 = vector.multi_reduction <maximumf>, %101, %cst_63 [1] : vector<1x128xf32> to vector<1xf32>
      %103 = vector.shape_cast %102 : vector<1xf32> to vector<1x1xf32>
      %104 = arith.cmpf one, %98, %98 : vector<1x128xf32>
      %105 = arith.extui %104 : vector<1x128xi1> to vector<1x128xi32>
      %106 = arith.sitofp %105 : vector<1x128xi32> to vector<1x128xf32>
      %cst_64 = arith.constant dense<0xFF800000> : vector<1xf32>
      %107 = vector.multi_reduction <maximumf>, %106, %cst_64 [1] : vector<1x128xf32> to vector<1xf32>
      %108 = vector.shape_cast %107 : vector<1xf32> to vector<1x1xf32>
      %cst_65 = arith.constant 5.000000e-01 : f32
      %109 = vector.broadcast %cst_65 : f32 to vector<1x1xf32>
      %110 = arith.cmpf olt, %103, %109 : vector<1x1xf32>
      %111 = vector.shape_cast %110 : vector<1x1xi1> to vector<1x1xi1>
      %112 = vector.broadcast %111 : vector<1x1xi1> to vector<1x128xi1>
      %113 = arith.select %112, %78, %68 : vector<1x128xi1>, vector<1x128xf32>
      %cst_66 = arith.constant 5.000000e-01 : f32
      %114 = vector.broadcast %cst_66 : f32 to vector<1x1xf32>
      %115 = arith.cmpf olt, %108, %114 : vector<1x1xf32>
      %116 = vector.shape_cast %115 : vector<1x1xi1> to vector<1x1xi1>
      %117 = vector.broadcast %116 : vector<1x1xi1> to vector<1x128xi1>
      %118 = arith.select %117, %98, %68 : vector<1x128xi1>, vector<1x128xf32>
      %c0_67 = arith.constant 0 : index
      %c0_68 = arith.constant 0 : index
      %119 = vector.load %arg19[%c0_67, %c0_68] : memref<32x128xf32, #tpu.memory_space<vmem>>, vector<1x128xf32>
      tpu.vector_store %arg19[%c0_67, %c0_68], %71 {strides = array<i32>} : memref<32x128xf32, #tpu.memory_space<vmem>>, vector<1x128xf32>,
      %c0_69 = arith.constant 0 : index
      %c0_70 = arith.constant 0 : index
      %120 = vector.load %arg21[%c0_69, %c0_70] : memref<32x128xf32, #tpu.memory_space<vmem>>, vector<1x128xf32>
      tpu.vector_store %arg21[%c0_69, %c0_70], %113 {strides = array<i32>} : memref<32x128xf32, #tpu.memory_space<vmem>>, vector<1x128xf32>,
      %121 = tpu.iota {dimensions = array<i32: 1>} : vector<1x128xi32>
      %c2_i32_71 = arith.constant 2 : i32
      %122 = vector.broadcast %c2_i32_71 : i32 to vector<1x128xi32>
      %123 = arith.cmpi slt, %121, %122 : vector<1x128xi32>
      %cst_72 = arith.constant -1.000000e+30 : f32
      %124 = vector.broadcast %cst_72 : f32 to vector<1x128xf32>
      %125 = arith.select %123, %71, %124 : vector<1x128xi1>, vector<1x128xf32>
      %cst_73 = arith.constant dense<0xFF800000> : vector<1xf32>
      %126 = vector.multi_reduction <maximumf>, %125, %cst_73 [1] : vector<1x128xf32> to vector<1xf32>
      %127 = vector.shape_cast %126 : vector<1xf32> to vector<1x1xf32>
      %128 = vector.broadcast %127 : vector<1x1xf32> to vector<1x128xf32>
      %129 = arith.subf %125, %128 : vector<1x128xf32>
      %130 = math.exp %129 : vector<1x128xf32>
      %cst_74 = arith.constant dense<0.000000e+00> : vector<1xf32>
      %131 = vector.multi_reduction <add>, %130, %cst_74 [1] : vector<1x128xf32> to vector<1xf32>
      %132 = vector.shape_cast %131 : vector<1xf32> to vector<1x1xf32>
      %133 = vector.broadcast %127 : vector<1x1xf32> to vector<1x128xf32>
      %134 = arith.subf %71, %133 : vector<1x128xf32>
      %135 = math.log %132 : vector<1x1xf32>
      %136 = vector.broadcast %135 : vector<1x1xf32> to vector<1x128xf32>
      %137 = arith.subf %134, %136 : vector<1x128xf32>
      %cst_75 = arith.constant 0.000000e+00 : f32
      %138 = vector.broadcast %cst_75 : f32 to vector<1x128xf32>
      %139 = arith.select %123, %137, %138 : vector<1x128xi1>, vector<1x128xf32>
      %c0_76 = arith.constant 0 : index
      %c0_77 = arith.constant 0 : index
      %140 = vector.load %arg18[%c0_76, %c0_77] : memref<32x128xf32, #tpu.memory_space<vmem>>, vector<1x128xf32>
      tpu.vector_store %arg18[%c0_76, %c0_77], %139 {strides = array<i32>} : memref<32x128xf32, #tpu.memory_space<vmem>>, vector<1x128xf32>,
      %141 = tpu.iota {dimensions = array<i32: 1>} : vector<1x128xi32>
      %c2_i32_78 = arith.constant 2 : i32
      %142 = vector.broadcast %c2_i32_78 : i32 to vector<1x128xi32>
      %143 = arith.cmpi slt, %141, %142 : vector<1x128xi32>
      %cst_79 = arith.constant -1.000000e+30 : f32
      %144 = vector.broadcast %cst_79 : f32 to vector<1x128xf32>
      %145 = arith.select %143, %113, %144 : vector<1x128xi1>, vector<1x128xf32>
      %cst_80 = arith.constant dense<0xFF800000> : vector<1xf32>
      %146 = vector.multi_reduction <maximumf>, %145, %cst_80 [1] : vector<1x128xf32> to vector<1xf32>
      %147 = vector.shape_cast %146 : vector<1xf32> to vector<1x1xf32>
      %148 = vector.broadcast %147 : vector<1x1xf32> to vector<1x128xf32>
      %149 = arith.subf %145, %148 : vector<1x128xf32>
      %150 = math.exp %149 : vector<1x128xf32>
      %cst_81 = arith.constant dense<0.000000e+00> : vector<1xf32>
      %151 = vector.multi_reduction <add>, %150, %cst_81 [1] : vector<1x128xf32> to vector<1xf32>
      %152 = vector.shape_cast %151 : vector<1xf32> to vector<1x1xf32>
      %153 = vector.broadcast %147 : vector<1x1xf32> to vector<1x128xf32>
      %154 = arith.subf %113, %153 : vector<1x128xf32>
      %155 = math.log %152 : vector<1x1xf32>
      %156 = vector.broadcast %155 : vector<1x1xf32> to vector<1x128xf32>
      %157 = arith.subf %154, %156 : vector<1x128xf32>
      %cst_82 = arith.constant 0.000000e+00 : f32
      %158 = vector.broadcast %cst_82 : f32 to vector<1x128xf32>
      %159 = arith.select %143, %157, %158 : vector<1x128xi1>, vector<1x128xf32>
      %c0_83 = arith.constant 0 : index
      %c0_84 = arith.constant 0 : index
      %160 = vector.load %arg20[%c0_83, %c0_84] : memref<32x128xf32, #tpu.memory_space<vmem>>, vector<1x128xf32>
      tpu.vector_store %arg20[%c0_83, %c0_84], %159 {strides = array<i32>} : memref<32x128xf32, #tpu.memory_space<vmem>>, vector<1x128xf32>,
      %161 = tpu.iota {dimensions = array<i32: 1>} : vector<1x128xi32>
      %c2_i32_85 = arith.constant 2 : i32
      %162 = vector.broadcast %c2_i32_85 : i32 to vector<1x128xi32>
      %163 = arith.cmpi slt, %161, %162 : vector<1x128xi32>
      %cst_86 = arith.constant -1.000000e+30 : f32
      %164 = vector.broadcast %cst_86 : f32 to vector<1x128xf32>
      %165 = arith.select %163, %118, %164 : vector<1x128xi1>, vector<1x128xf32>
      %cst_87 = arith.constant dense<0xFF800000> : vector<1xf32>
      %166 = vector.multi_reduction <maximumf>, %165, %cst_87 [1] : vector<1x128xf32> to vector<1xf32>
      %167 = vector.shape_cast %166 : vector<1xf32> to vector<1x1xf32>
      %168 = vector.broadcast %167 : vector<1x1xf32> to vector<1x128xf32>
      %169 = arith.subf %165, %168 : vector<1x128xf32>
      %170 = math.exp %169 : vector<1x128xf32>
      %cst_88 = arith.constant dense<0.000000e+00> : vector<1xf32>
      %171 = vector.multi_reduction <add>, %170, %cst_88 [1] : vector<1x128xf32> to vector<1xf32>
      %172 = vector.shape_cast %171 : vector<1xf32> to vector<1x1xf32>
      %173 = vector.broadcast %167 : vector<1x1xf32> to vector<1x128xf32>
      %174 = arith.subf %118, %173 : vector<1x128xf32>
      %175 = math.log %172 : vector<1x1xf32>
      %176 = vector.broadcast %175 : vector<1x1xf32> to vector<1x128xf32>
      %177 = arith.subf %174, %176 : vector<1x128xf32>
      %cst_89 = arith.constant 0.000000e+00 : f32
      %178 = vector.broadcast %cst_89 : f32 to vector<1x128xf32>
      %179 = arith.select %163, %177, %178 : vector<1x128xi1>, vector<1x128xf32>
      %c0_90 = arith.constant 0 : index
      %c0_91 = arith.constant 0 : index
      %180 = vector.load %arg22[%c0_90, %c0_91] : memref<32x128xf32, #tpu.memory_space<vmem>>, vector<1x128xf32>
      tpu.vector_store %arg22[%c0_90, %c0_91], %179 {strides = array<i32>} : memref<32x128xf32, #tpu.memory_space<vmem>>, vector<1x128xf32>,
    } else {
    }
    return
  }
  func.func @transform_0(%arg0: i32) -> i32 {
    %c0_i32 = arith.constant 0 : i32
    %c0_i32_0 = arith.constant 0 : i32
    return %c0_i32 : i32
  }
  func.func @transform_1(%arg0: i32) -> (i32, i32) {
    %c0_i32 = arith.constant 0 : i32
    %c0_i32_0 = arith.constant 0 : i32
    %c0_i32_1 = arith.constant 0 : i32
    return %c0_i32, %c0_i32_0 : i32, i32
  }
  func.func @transform_2(%arg0: i32) -> (i32, i32) {
    %c0_i32 = arith.constant 0 : i32
    %c0_i32_0 = arith.constant 0 : i32
    %c0_i32_1 = arith.constant 0 : i32
    return %c0_i32, %c0_i32_0 : i32, i32
  }
  func.func @transform_3(%arg0: i32) -> (i32, i32) {
    %c0_i32 = arith.constant 0 : i32
    %c0_i32_0 = arith.constant 0 : i32
    %c0_i32_1 = arith.constant 0 : i32
    return %c0_i32, %c0_i32_0 : i32, i32
  }
  func.func @transform_4(%arg0: i32) -> (i32, i32) {
    %c0_i32 = arith.constant 0 : i32
    %c0_i32_0 = arith.constant 0 : i32
    %c0_i32_1 = arith.constant 0 : i32
    return %c0_i32, %c0_i32_0 : i32, i32
  }
  func.func @transform_5(%arg0: i32) -> (i32, i32) {
    %c0_i32 = arith.constant 0 : i32
    %c0_i32_0 = arith.constant 0 : i32
    %c0_i32_1 = arith.constant 0 : i32
    return %c0_i32, %c0_i32_0 : i32, i32
  }
  func.func @transform_6(%arg0: i32) -> (i32, i32) {
    %c0_i32 = arith.constant 0 : i32
    %c0_i32_0 = arith.constant 0 : i32
    %c0_i32_1 = arith.constant 0 : i32
    return %c0_i32, %c0_i32_0 : i32, i32
  }
  func.func @transform_7(%arg0: i32) -> (i32, i32) {
    %c0_i32 = arith.constant 0 : i32
    %c0_i32_0 = arith.constant 0 : i32
    %c0_i32_1 = arith.constant 0 : i32
    return %c0_i32, %c0_i32_0 : i32, i32
  }
  func.func @transform_8(%arg0: i32) -> (i32, i32) {
    %c0_i32 = arith.constant 0 : i32
    %c0_i32_0 = arith.constant 0 : i32
    %c0_i32_1 = arith.constant 0 : i32
    return %c0_i32, %c0_i32_0 : i32, i32
  }
  func.func @transform_9(%arg0: i32) -> (i32, i32) {
    %c0_i32 = arith.constant 0 : i32
    %c0_i32_0 = arith.constant 0 : i32
    %c0_i32_1 = arith.constant 0 : i32
    return %c0_i32, %c0_i32_0 : i32, i32
  }
  func.func @transform_10(%arg0: i32) -> (i32, i32) {
    %c0_i32 = arith.constant 0 : i32
    %c0_i32_0 = arith.constant 0 : i32
    %c0_i32_1 = arith.constant 0 : i32
    return %c0_i32, %c0_i32_0 : i32, i32
  }
  func.func @transform_11(%arg0: i32) -> (i32, i32) {
    %c0_i32 = arith.constant 0 : i32
    %c0_i32_0 = arith.constant 0 : i32
    %c0_i32_1 = arith.constant 0 : i32
    return %c0_i32, %c0_i32_0 : i32, i32
  }
  func.func @transform_12(%arg0: i32) -> (i32, i32) {
    %c0_i32 = arith.constant 0 : i32
    %c0_i32_0 = arith.constant 0 : i32
    %c0_i32_1 = arith.constant 0 : i32
    return %c0_i32, %c0_i32_0 : i32, i32
  }
  func.func @transform_13(%arg0: i32) -> (i32, i32) {
    %c0_i32 = arith.constant 0 : i32
    %c0_i32_0 = arith.constant 0 : i32
    %c0_i32_1 = arith.constant 0 : i32
    return %c0_i32, %c0_i32_0 : i32, i32
  }
  func.func @transform_14(%arg0: i32) -> (i32, i32) {
    %c0_i32 = arith.constant 0 : i32
    %c0_i32_0 = arith.constant 0 : i32
    %c0_i32_1 = arith.constant 0 : i32
    return %c0_i32, %c0_i32_0 : i32, i32
  }
  func.func @transform_15(%arg0: i32) -> (i32, i32) {
    %c0_i32 = arith.constant 0 : i32
    %c0_i32_0 = arith.constant 0 : i32
    %c0_i32_1 = arith.constant 0 : i32
    return %c0_i32, %c0_i32_0 : i32, i32
  }
  func.func @transform_16(%arg0: i32) -> (i32, i32) {
    %c0_i32 = arith.constant 0 : i32
    %c0_i32_0 = arith.constant 0 : i32
    %c0_i32_1 = arith.constant 0 : i32
    return %c0_i32, %c0_i32_0 : i32, i32
  }
  func.func @transform_17(%arg0: i32) -> (i32, i32) {
    %c0_i32 = arith.constant 0 : i32
    %c0_i32_0 = arith.constant 0 : i32
    %c0_i32_1 = arith.constant 0 : i32
    return %c0_i32, %c0_i32_0 : i32, i32
  }
  func.func @transform_18(%arg0: i32) -> (i32, i32) {
    %c0_i32 = arith.constant 0 : i32
    %c0_i32_0 = arith.constant 0 : i32
    %c0_i32_1 = arith.constant 0 : i32
    return %c0_i32, %c0_i32_0 : i32, i32
  }
  func.func @transform_19(%arg0: i32) -> (i32, i32) {
    %c0_i32 = arith.constant 0 : i32
    %c0_i32_0 = arith.constant 0 : i32
    %c0_i32_1 = arith.constant 0 : i32
    return %c0_i32, %c0_i32_0 : i32, i32
  }
  func.func @transform_20(%arg0: i32) -> (i32, i32) {
    %c0_i32 = arith.constant 0 : i32
    %c0_i32_0 = arith.constant 0 : i32
    %c0_i32_1 = arith.constant 0 : i32
    return %c0_i32, %c0_i32_0 : i32, i32
  }
  func.func @transform_21(%arg0: i32) -> (i32, i32) {
    %c0_i32 = arith.constant 0 : i32
    %c0_i32_0 = arith.constant 0 : i32
    %c0_i32_1 = arith.constant 0 : i32
    return %c0_i32, %c0_i32_0 : i32, i32
  }
}

</mosaic_0001>

<llo_original>
// kernel: _gnn_forward_jit.1
$region0: #{_gnn_forward_jit.1}
  #allocation0 [shape = 'u32[]', space=smem, size = 0x4, offset = 0x4, fixed_abs, tag = 'smem constant byte address 0x4 - core index']
  #allocation1 [shape = 'u32[144,128]{1,0:T(1,128)}', space=vmem, size = 0x12000, scoped, tag = 'internal scratch']
  %s0 = inlined_call_operand.hbm [shape: f32[3], index: 0, kind: input, shape index: {}]
  %s1 = inlined_call_operand.hbm [shape: bf16[32,32], index: 1, kind: input, shape index: {}]
  %s2 = inlined_call_operand.hbm [shape: f32[32,1], index: 2, kind: input, shape index: {}]
  %s3 = inlined_call_operand.hbm [shape: f32[1,32], index: 3, kind: input, shape index: {}]
  %s4 = inlined_call_operand.hbm [shape: f32[32,128], index: 4, kind: input, shape index: {}]
  %s5 = inlined_call_operand.hbm [shape: f32[128,128], index: 5, kind: input, shape index: {}]
  %s6 = inlined_call_operand.hbm [shape: f32[1,128], index: 6, kind: input, shape index: {}]
  %s7 = inlined_call_operand.hbm [shape: f32[128,128], index: 7, kind: input, shape index: {}]
  %s8 = inlined_call_operand.hbm [shape: f32[1,128], index: 8, kind: input, shape index: {}]
  %s9 = inlined_call_operand.hbm [shape: f32[128,128], index: 9, kind: input, shape index: {}]
  %s10 = inlined_call_operand.hbm [shape: f32[1,128], index: 10, kind: input, shape index: {}]
  %s11 = inlined_call_operand.hbm [shape: f32[128,128], index: 11, kind: input, shape index: {}]
  %s12 = inlined_call_operand.hbm [shape: f32[1,128], index: 12, kind: input, shape index: {}]
  %s13 = inlined_call_operand.hbm [shape: f32[128,128], index: 13, kind: input, shape index: {}]
  %s14 = inlined_call_operand.hbm [shape: f32[1,128], index: 14, kind: input, shape index: {}]
  %s15 = inlined_call_operand.hbm [shape: f32[128,128], index: 15, kind: input, shape index: {}]
  %s16 = inlined_call_operand.hbm [shape: f32[1,128], index: 16, kind: input, shape index: {}]
  %s17 = inlined_call_operand.hbm [shape: f32[32,128], index: 17, kind: output, shape index: {0}]
  %s18 = inlined_call_operand.hbm [shape: f32[32,128], index: 18, kind: output, shape index: {1}]
  %s19 = inlined_call_operand.hbm [shape: f32[32,128], index: 19, kind: output, shape index: {2}]
  %s20 = inlined_call_operand.hbm [shape: f32[32,128], index: 20, kind: output, shape index: {3}]
  %s21 = inlined_call_operand.hbm [shape: f32[32,128], index: 21, kind: output, shape index: {4}]
  %22 = xla_tuple %s17, %s18, %s19, %s20, %s21
  %s23 = sld [smem:[#allocation0]]
  $region182: #{_gnn_forward_jit.1} parent=0
    _
  %s25 = ssub.s32 1, %s23
  %s26 = scalar_select 0, %s25, %s23
  $region1: #{_gnn_forward_jit.1} parent=0
    #allocation2 [shape = 'u8[512]{0}', space=smem, size = 0x200, scoped, tag = 'input window, operand 0, single buffered']
    #allocation3 [shape = 's32[1]{0}', space=sflag, size = 0x4, scoped, tag = 'scoped memory for _gnn_forward_jit.1']
    #allocation4 [shape = 's32[1]{0}', space=sflag, size = 0x4, scoped, tag = 'scoped memory for _gnn_forward_jit.1']
    #allocation5 [shape = 's32[1]{0}', space=sflag, size = 0x4, scoped, tag = 'scoped memory for _gnn_forward_jit.1']
    #allocation6 [shape = 'u8[8192]{0}', space=vmem, size = 0x2000, scoped, tag = 'input window, operand 1, single buffered']
    #allocation7 [shape = 'u8[16384]{0}', space=vmem, size = 0x4000, scoped, tag = 'input window, operand 2, single buffered']
    #allocation8 [shape = 's32[1]{0}', space=sflag, size = 0x4, scoped, tag = 'scoped memory for _gnn_forward_jit.1']
    #allocation9 [shape = 'u8[512]{0}', space=vmem, size = 0x400, scoped, tag = 'input window, operand 3, single buffered']
    #allocation10 [shape = 'u8[16384]{0}', space=vmem, size = 0x4000, scoped, tag = 'input window, operand 4, single buffered']
    #allocation11 [shape = 's32[1]{0}', space=sflag, size = 0x4, scoped, tag = 'scoped memory for _gnn_forward_jit.1']
    #allocation12 [shape = 'u8[65536]{0}', space=vmem, size = 0x10000, scoped, tag = 'input window, operand 5, single buffered']
    #allocation13 [shape = 'u8[512]{0}', space=vmem, size = 0x400, scoped, tag = 'input window, operand 6, single buffered']
    #allocation14 [shape = 's32[1]{0}', space=sflag, size = 0x4, scoped, tag = 'scoped memory for _gnn_forward_jit.1']
    #allocation15 [shape = 'u8[65536]{0}', space=vmem, size = 0x10000, scoped, tag = 'input window, operand 7, single buffered']
    #allocation16 [shape = 'u8[512]{0}', space=vmem, size = 0x400, scoped, tag = 'input window, operand 8, single buffered']
    #allocation17 [shape = 's32[1]{0}', space=sflag, size = 0x4, scoped, tag = 'scoped memory for _gnn_forward_jit.1']
    #allocation18 [shape = 'u8[65536]{0}', space=vmem, size = 0x10000, scoped, tag = 'input window, operand 9, single buffered']
    #allocation19 [shape = 'u8[512]{0}', space=vmem, size = 0x400, scoped, tag = 'input window, operand 10, single buffered']
    #allocation20 [shape = 's32[1]{0}', space=sflag, size = 0x4, scoped, tag = 'scoped memory for _gnn_forward_jit.1']
    #allocation21 [shape = 'u8[65536]{0}', space=vmem, size = 0x10000, scoped, tag = 'input window, operand 11, single buffered']
    #allocation22 [shape = 'u8[512]{0}', space=vmem, size = 0x400, scoped, tag = 'input window, operand 12, single buffered']
    #allocation23 [shape = 's32[1]{0}', space=sflag, size = 0x4, scoped, tag = 'scoped memory for _gnn_forward_jit.1']
    #allocation24 [shape = 'u8[65536]{0}', space=vmem, size = 0x10000, scoped, tag = 'input window, operand 13, single buffered']
    #allocation25 [shape = 'u8[512]{0}', space=vmem, size = 0x400, scoped, tag = 'input window, operand 14, single buffered']
    #allocation26 [shape = 's32[1]{0}', space=sflag, size = 0x4, scoped, tag = 'scoped memory for _gnn_forward_jit.1']
    #allocation27 [shape = 'u8[65536]{0}', space=vmem, size = 0x10000, scoped, tag = 'input window, operand 15, single buffered']
    #allocation28 [shape = 'u8[512]{0}', space=vmem, size = 0x400, scoped, tag = 'input window, operand 16, single buffered']
    #allocation29 [shape = 's32[1]{0}', space=sflag, size = 0x4, scoped, tag = 'scoped memory for _gnn_forward_jit.1']
    #allocation30 [shape = 'u8[16384]{0}', space=vmem, size = 0x4000, scoped, tag = 'output window, operand 0, single buffered']
    #allocation31 [shape = 'u8[16384]{0}', space=vmem, size = 0x4000, scoped, tag = 'output window, operand 1, single buffered']
    #allocation32 [shape = 's32[1]{0}', space=sflag, size = 0x4, scoped, tag = 'scoped memory for _gnn_forward_jit.1']
    #allocation33 [shape = 'u8[16384]{0}', space=vmem, size = 0x4000, scoped, tag = 'output window, operand 2, single buffered']
    #allocation34 [shape = 'u8[16384]{0}', space=vmem, size = 0x4000, scoped, tag = 'output window, operand 3, single buffered']
    #allocation35 [shape = 's32[1]{0}', space=sflag, size = 0x4, scoped, tag = 'scoped memory for _gnn_forward_jit.1']
    #allocation36 [shape = 'u8[16384]{0}', space=vmem, size = 0x4000, scoped, tag = 'output window, operand 4, single buffered']
    %27 = vsyncpa [#allocation5], 0
    %28 = vsyncpa [#allocation3], 0
    %29 = vsyncpa [#allocation8], 0
    %30 = vsyncpa [#allocation11], 0
    %31 = vsyncpa [#allocation14], 0
    %32 = vsyncpa [#allocation17], 0
    %33 = vsyncpa [#allocation20], 0
    %34 = vsyncpa [#allocation23], 0
    %35 = vsyncpa [#allocation26], 0
    %36 = vsyncpa [#allocation29], 0
    %37 = vsyncpa [#allocation4], 0
    %38 = vsyncpa [#allocation32], 0
    %39 = vsyncpa [#allocation35], 0
    // Predicated region
    $region2: #{_gnn_forward_jit.1} parent=1 // pred_check
      _
    $region3: #{_gnn_forward_jit.1} parent=1 // pred_check_branch
      %41 = sbr.rel (0) target = $region5
    $region4: #{_gnn_forward_jit.1} parent=1 // pred_region
      %s43 = ssub.s32 16, 16
      %44 = vsyncadd [#allocation5], %s43
      %47 = dma.hbm_to_smem %s0, 16, [#allocation2], [#allocation5]
    $region5: #{_gnn_forward_jit.1} parent=1 // pred_fallthru
      _
    // Predicated region
    $region6: #{_gnn_forward_jit.1} parent=1 // pred_check
      _
    $region7: #{_gnn_forward_jit.1} parent=1 // pred_check_branch
      %49 = sbr.rel (0) target = $region9
    $region8: #{_gnn_forward_jit.1} parent=1 // pred_region
      %s51 = ssub.s32 256, 256
      %52 = vsyncadd [#allocation3], %s51
      %s53 = sshll.u32 [#allocation6], 4
      %s54 = int_to_ptr.vmem [resolvable:$true] %s53
      %59 = dma.hbm_to_vmem [thread:$0]  %s1, 256, %s54, [#allocation3], 64, 64, 4
    $region9: #{_gnn_forward_jit.1} parent=1 // pred_fallthru
      _
    // Predicated region
    $region10: #{_gnn_forward_jit.1} parent=1 // pred_check
      _
    $region11: #{_gnn_forward_jit.1} parent=1 // pred_check_branch
      %61 = sbr.rel (0) target = $region13
    $region12: #{_gnn_forward_jit.1} parent=1 // pred_region
      %s63 = ssub.s32 512, 512
      %64 = vsyncadd [#allocation8], %s63
      %s65 = sshll.u32 [#allocation7], 4
      %s66 = int_to_ptr.vmem [resolvable:$true] %s65
      %71 = dma.hbm_to_vmem [thread:$0]  %s2, 512, %s66, [#allocation8], 128, 128, 8
    $region13: #{_gnn_forward_jit.1} parent=1 // pred_fallthru
      _
    // Predicated region
    $region14: #{_gnn_forward_jit.1} parent=1 // pred_check
      _
    $region15: #{_gnn_forward_jit.1} parent=1 // pred_check_branch
      %73 = sbr.rel (0) target = $region17
    $region16: #{_gnn_forward_jit.1} parent=1 // pred_region
      %s75 = ssub.s32 16, 16
      %76 = vsyncadd [#allocation8], %s75
      %s78 = sshll.u32 [#allocation9], 4
      %s79 = int_to_ptr.vmem [resolvable:$true] %s78
      %81 = dma.hbm_to_vmem [thread:$0]  %s3, 16, %s79, [#allocation8]
    $region17: #{_gnn_forward_jit.1} parent=1 // pred_fallthru
      _
    // Predicated region
    $region18: #{_gnn_forward_jit.1} parent=1 // pred_check
      _
    $region19: #{_gnn_forward_jit.1} parent=1 // pred_check_branch
      %83 = sbr.rel (0) target = $region21
    $region20: #{_gnn_forward_jit.1} parent=1 // pred_region
      %s85 = ssub.s32 512, 512
      %86 = vsyncadd [#allocation11], %s85
      %s87 = sshll.u32 [#allocation10], 4
      %s88 = int_to_ptr.vmem [resolvable:$true] %s87
      %93 = dma.hbm_to_vmem [thread:$0]  %s4, 512, %s88, [#allocation11], 128, 128, 8
    $region21: #{_gnn_forward_jit.1} parent=1 // pred_fallthru
      _
    // Predicated region
    $region22: #{_gnn_forward_jit.1} parent=1 // pred_check
      _
    $region23: #{_gnn_forward_jit.1} parent=1 // pred_check_branch
      %95 = sbr.rel (0) target = $region25
    $region24: #{_gnn_forward_jit.1} parent=1 // pred_region
      %s97 = ssub.s32 2048, 2048
      %98 = vsyncadd [#allocation11], %s97
      %s99 = sshll.u32 [#allocation12], 4
      %s100 = int_to_ptr.vmem [resolvable:$true] %s99
      %105 = dma.hbm_to_vmem [thread:$0]  %s5, 2048, %s100, [#allocation11], 128, 128, 8
    $region25: #{_gnn_forward_jit.1} parent=1 // pred_fallthru
      _
    // Predicated region
    $region26: #{_gnn_forward_jit.1} parent=1 // pred_check
      _
    $region27: #{_gnn_forward_jit.1} parent=1 // pred_check_branch
      %107 = sbr.rel (0) target = $region29
    $region28: #{_gnn_forward_jit.1} parent=1 // pred_region
      %s109 = ssub.s32 16, 16
      %110 = vsyncadd [#allocation14], %s109
      %s112 = sshll.u32 [#allocation13], 4
      %s113 = int_to_ptr.vmem [resolvable:$true] %s112
      %115 = dma.hbm_to_vmem [thread:$0]  %s6, 16, %s113, [#allocation14]
    $region29: #{_gnn_forward_jit.1} parent=1 // pred_fallthru
      _
    // Predicated region
    $region30: #{_gnn_forward_jit.1} parent=1 // pred_check
      _
    $region31: #{_gnn_forward_jit.1} parent=1 // pred_check_branch
      %117 = sbr.rel (0) target = $region33
    $region32: #{_gnn_forward_jit.1} parent=1 // pred_region
      %s119 = ssub.s32 2048, 2048
      %120 = vsyncadd [#allocation14], %s119
      %s121 = sshll.u32 [#allocation15], 4
      %s122 = int_to_ptr.vmem [resolvable:$true] %s121
      %127 = dma.hbm_to_vmem [thread:$0]  %s7, 2048, %s122, [#allocation14], 128, 128, 8
    $region33: #{_gnn_forward_jit.1} parent=1 // pred_fallthru
      _
    // Predicated region
    $region34: #{_gnn_forward_jit.1} parent=1 // pred_check
      _
    $region35: #{_gnn_forward_jit.1} parent=1 // pred_check_branch
      %129 = sbr.rel (0) target = $region37
    $region36: #{_gnn_forward_jit.1} parent=1 // pred_region
      %s131 = ssub.s32 16, 16
      %132 = vsyncadd [#allocation17], %s131
      %s134 = sshll.u32 [#allocation16], 4
      %s135 = int_to_ptr.vmem [resolvable:$true] %s134
      %137 = dma.hbm_to_vmem [thread:$0]  %s8, 16, %s135, [#allocation17]
    $region37: #{_gnn_forward_jit.1} parent=1 // pred_fallthru
      _
    // Predicated region
    $region38: #{_gnn_forward_jit.1} parent=1 // pred_check
      _
    $region39: #{_gnn_forward_jit.1} parent=1 // pred_check_branch
      %139 = sbr.rel (0) target = $region41
    $region40: #{_gnn_forward_jit.1} parent=1 // pred_region
      %s141 = ssub.s32 2048, 2048
      %142 = vsyncadd [#allocation17], %s141
      %s143 = sshll.u32 [#allocation18], 4
      %s144 = int_to_ptr.vmem [resolvable:$true] %s143
      %149 = dma.hbm_to_vmem [thread:$0]  %s9, 2048, %s144, [#allocation17], 128, 128, 8
    $region41: #{_gnn_forward_jit.1} parent=1 // pred_fallthru
      _
    // Predicated region
    $region42: #{_gnn_forward_jit.1} parent=1 // pred_check
      _
    $region43: #{_gnn_forward_jit.1} parent=1 // pred_check_branch
      %151 = sbr.rel (0) target = $region45
    $region44: #{_gnn_forward_jit.1} parent=1 // pred_region
      %s153 = ssub.s32 16, 16
      %154 = vsyncadd [#allocation20], %s153
      %s156 = sshll.u32 [#allocation19], 4
      %s157 = int_to_ptr.vmem [resolvable:$true] %s156
      %159 = dma.hbm_to_vmem [thread:$0]  %s10, 16, %s157, [#allocation20]
    $region45: #{_gnn_forward_jit.1} parent=1 // pred_fallthru
      _
    // Predicated region
    $region46: #{_gnn_forward_jit.1} parent=1 // pred_check
      _
    $region47: #{_gnn_forward_jit.1} parent=1 // pred_check_branch
      %161 = sbr.rel (0) target = $region49
    $region48: #{_gnn_forward_jit.1} parent=1 // pred_region
      %s163 = ssub.s32 2048, 2048
      %164 = vsyncadd [#allocation20], %s163
      %s165 = sshll.u32 [#allocation21], 4
      %s166 = int_to_ptr.vmem [resolvable:$true] %s165
      %171 = dma.hbm_to_vmem [thread:$0]  %s11, 2048, %s166, [#allocation20], 128, 128, 8
    $region49: #{_gnn_forward_jit.1} parent=1 // pred_fallthru
      _
    // Predicated region
    $region50: #{_gnn_forward_jit.1} parent=1 // pred_check
      _
    $region51: #{_gnn_forward_jit.1} parent=1 // pred_check_branch
      %173 = sbr.rel (0) target = $region53
    $region52: #{_gnn_forward_jit.1} parent=1 // pred_region
      %s175 = ssub.s32 16, 16
      %176 = vsyncadd [#allocation23], %s175
      %s178 = sshll.u32 [#allocation22], 4
      %s179 = int_to_ptr.vmem [resolvable:$true] %s178
      %181 = dma.hbm_to_vmem [thread:$0]  %s12, 16, %s179, [#allocation23]
    $region53: #{_gnn_forward_jit.1} parent=1 // pred_fallthru
      _
    // Predicated region
    $region54: #{_gnn_forward_jit.1} parent=1 // pred_check
      _
    $region55: #{_gnn_forward_jit.1} parent=1 // pred_check_branch
      %183 = sbr.rel (0) target = $region57
    $region56: #{_gnn_forward_jit.1} parent=1 // pred_region
      %s185 = ssub.s32 2048, 2048
      %186 = vsyncadd [#allocation23], %s185
      %s187 = sshll.u32 [#allocation24], 4
      %s188 = int_to_ptr.vmem [resolvable:$true] %s187
      %193 = dma.hbm_to_vmem [thread:$0]  %s13, 2048, %s188, [#allocation23], 128, 128, 8
    $region57: #{_gnn_forward_jit.1} parent=1 // pred_fallthru
      _
    // Predicated region
    $region58: #{_gnn_forward_jit.1} parent=1 // pred_check
      _
    $region59: #{_gnn_forward_jit.1} parent=1 // pred_check_branch
      %195 = sbr.rel (0) target = $region61
    $region60: #{_gnn_forward_jit.1} parent=1 // pred_region
      %s197 = ssub.s32 16, 16
      %198 = vsyncadd [#allocation26], %s197
      %s200 = sshll.u32 [#allocation25], 4
      %s201 = int_to_ptr.vmem [resolvable:$true] %s200
      %203 = dma.hbm_to_vmem [thread:$0]  %s14, 16, %s201, [#allocation26]
    $region61: #{_gnn_forward_jit.1} parent=1 // pred_fallthru
      _
    // Predicated region
    $region62: #{_gnn_forward_jit.1} parent=1 // pred_check
      _
    $region63: #{_gnn_forward_jit.1} parent=1 // pred_check_branch
      %205 = sbr.rel (0) target = $region65
    $region64: #{_gnn_forward_jit.1} parent=1 // pred_region
      %s207 = ssub.s32 2048, 2048
      %208 = vsyncadd [#allocation26], %s207
      %s209 = sshll.u32 [#allocation27], 4
      %s210 = int_to_ptr.vmem [resolvable:$true] %s209
      %215 = dma.hbm_to_vmem [thread:$0]  %s15, 2048, %s210, [#allocation26], 128, 128, 8
    $region65: #{_gnn_forward_jit.1} parent=1 // pred_fallthru
      _
    // Predicated region
    $region66: #{_gnn_forward_jit.1} parent=1 // pred_check
      _
    $region67: #{_gnn_forward_jit.1} parent=1 // pred_check_branch
      %217 = sbr.rel (0) target = $region69
    $region68: #{_gnn_forward_jit.1} parent=1 // pred_region
      %s219 = ssub.s32 16, 16
      %220 = vsyncadd [#allocation29], %s219
      %s222 = sshll.u32 [#allocation28], 4
      %s223 = int_to_ptr.vmem [resolvable:$true] %s222
      %225 = dma.hbm_to_vmem [thread:$0]  %s16, 16, %s223, [#allocation29]
    $region69: #{_gnn_forward_jit.1} parent=1 // pred_fallthru
      _
    // Predicated region
    $region70: #{_gnn_forward_jit.1} parent=1 // pred_check
      _
    $region71: #{_gnn_forward_jit.1} parent=1 // pred_check_branch
      %227 = sbr.rel (0) target = $region73
    $region72: #{_gnn_forward_jit.1} parent=1 // pred_region
      %228 = dma.done [#allocation5], 16
    $region73: #{_gnn_forward_jit.1} parent=1 // pred_fallthru
      _
    // Predicated region
    $region74: #{_gnn_forward_jit.1} parent=1 // pred_check
      _
    $region75: #{_gnn_forward_jit.1} parent=1 // pred_check_branch
      %230 = sbr.rel (0) target = $region77
    $region76: #{_gnn_forward_jit.1} parent=1 // pred_region
      %231 = dma.done [#allocation3], 256
    $region77: #{_gnn_forward_jit.1} parent=1 // pred_fallthru
      _
    // Predicated region
    $region78: #{_gnn_forward_jit.1} parent=1 // pred_check
      _
    $region79: #{_gnn_forward_jit.1} parent=1 // pred_check_branch
      %233 = sbr.rel (0) target = $region81
    $region80: #{_gnn_forward_jit.1} parent=1 // pred_region
      %234 = dma.done [#allocation8], 512
    $region81: #{_gnn_forward_jit.1} parent=1 // pred_fallthru
      _
    // Predicated region
    $region82: #{_gnn_forward_jit.1} parent=1 // pred_check
      _
    $region83: #{_gnn_forward_jit.1} parent=1 // pred_check_branch
      %236 = sbr.rel (0) target = $region85
    $region84: #{_gnn_forward_jit.1} parent=1 // pred_region
      %237 = dma.done [#allocation8], 16
    $region85: #{_gnn_forward_jit.1} parent=1 // pred_fallthru
      _
    // Predicated region
    $region86: #{_gnn_forward_jit.1} parent=1 // pred_check
      _
    $region87: #{_gnn_forward_jit.1} parent=1 // pred_check_branch
      %239 = sbr.rel (0) target = $region89
    $region88: #{_gnn_forward_jit.1} parent=1 // pred_region
      %240 = dma.done [#allocation11], 512
    $region89: #{_gnn_forward_jit.1} parent=1 // pred_fallthru
      _
    // Predicated region
    $region90: #{_gnn_forward_jit.1} parent=1 // pred_check
      _
    $region91: #{_gnn_forward_jit.1} parent=1 // pred_check_branch
      %242 = sbr.rel (0) target = $region93
    $region92: #{_gnn_forward_jit.1} parent=1 // pred_region
      %243 = dma.done [#allocation11], 2048
    $region93: #{_gnn_forward_jit.1} parent=1 // pred_fallthru
      _
    // Predicated region
    $region94: #{_gnn_forward_jit.1} parent=1 // pred_check
      _
    $region95: #{_gnn_forward_jit.1} parent=1 // pred_check_branch
      %245 = sbr.rel (0) target = $region97
    $region96: #{_gnn_forward_jit.1} parent=1 // pred_region
      %246 = dma.done [#allocation14], 16
    $region97: #{_gnn_forward_jit.1} parent=1 // pred_fallthru
      _
    // Predicated region
    $region98: #{_gnn_forward_jit.1} parent=1 // pred_check
      _
    $region99: #{_gnn_forward_jit.1} parent=1 // pred_check_branch
      %248 = sbr.rel (0) target = $region101
    $region100: #{_gnn_forward_jit.1} parent=1 // pred_region
      %249 = dma.done [#allocation14], 2048
    $region101: #{_gnn_forward_jit.1} parent=1 // pred_fallthru
      _
    // Predicated region
    $region102: #{_gnn_forward_jit.1} parent=1 // pred_check
      _
    $region103: #{_gnn_forward_jit.1} parent=1 // pred_check_branch
      %251 = sbr.rel (0) target = $region105
    $region104: #{_gnn_forward_jit.1} parent=1 // pred_region
      %252 = dma.done [#allocation17], 16
    $region105: #{_gnn_forward_jit.1} parent=1 // pred_fallthru
      _
    // Predicated region
    $region106: #{_gnn_forward_jit.1} parent=1 // pred_check
      _
    $region107: #{_gnn_forward_jit.1} parent=1 // pred_check_branch
      %254 = sbr.rel (0) target = $region109
    $region108: #{_gnn_forward_jit.1} parent=1 // pred_region
      %255 = dma.done [#allocation17], 2048
    $region109: #{_gnn_forward_jit.1} parent=1 // pred_fallthru
      _
    // Predicated region
    $region110: #{_gnn_forward_jit.1} parent=1 // pred_check
      _
    $region111: #{_gnn_forward_jit.1} parent=1 // pred_check_branch
      %257 = sbr.rel (0) target = $region113
    $region112: #{_gnn_forward_jit.1} parent=1 // pred_region
      %258 = dma.done [#allocation20], 16
    $region113: #{_gnn_forward_jit.1} parent=1 // pred_fallthru
      _
    // Predicated region
    $region114: #{_gnn_forward_jit.1} parent=1 // pred_check
      _
    $region115: #{_gnn_forward_jit.1} parent=1 // pred_check_branch
      %260 = sbr.rel (0) target = $region117
    $region116: #{_gnn_forward_jit.1} parent=1 // pred_region
      %261 = dma.done [#allocation20], 2048
    $region117: #{_gnn_forward_jit.1} parent=1 // pred_fallthru
      _
    // Predicated region
    $region118: #{_gnn_forward_jit.1} parent=1 // pred_check
      _
    $region119: #{_gnn_forward_jit.1} parent=1 // pred_check_branch
      %263 = sbr.rel (0) target = $region121
    $region120: #{_gnn_forward_jit.1} parent=1 // pred_region
      %264 = dma.done [#allocation23], 16
    $region121: #{_gnn_forward_jit.1} parent=1 // pred_fallthru
      _
    // Predicated region
    $region122: #{_gnn_forward_jit.1} parent=1 // pred_check
      _
    $region123: #{_gnn_forward_jit.1} parent=1 // pred_check_branch
      %266 = sbr.rel (0) target = $region125
    $region124: #{_gnn_forward_jit.1} parent=1 // pred_region
      %267 = dma.done [#allocation23], 2048
    $region125: #{_gnn_forward_jit.1} parent=1 // pred_fallthru
      _
    // Predicated region
    $region126: #{_gnn_forward_jit.1} parent=1 // pred_check
      _
    $region127: #{_gnn_forward_jit.1} parent=1 // pred_check_branch
      %269 = sbr.rel (0) target = $region129
    $region128: #{_gnn_forward_jit.1} parent=1 // pred_region
      %270 = dma.done [#allocation26], 16
    $region129: #{_gnn_forward_jit.1} parent=1 // pred_fallthru
      _
    // Predicated region
    $region130: #{_gnn_forward_jit.1} parent=1 // pred_check
      _
    $region131: #{_gnn_forward_jit.1} parent=1 // pred_check_branch
      %272 = sbr.rel (0) target = $region133
    $region132: #{_gnn_forward_jit.1} parent=1 // pred_region
      %273 = dma.done [#allocation26], 2048
    $region133: #{_gnn_forward_jit.1} parent=1 // pred_fallthru
      _
    // Predicated region
    $region134: #{_gnn_forward_jit.1} parent=1 // pred_check
      _
    $region135: #{_gnn_forward_jit.1} parent=1 // pred_check_branch
      %275 = sbr.rel (0) target = $region137
    $region136: #{_gnn_forward_jit.1} parent=1 // pred_region
      %276 = dma.done [#allocation29], 16
    $region137: #{_gnn_forward_jit.1} parent=1 // pred_fallthru
      _
    %277 = sfence
    %v279 = vld [vmem:[#allocation6] sm:$0xf]
    %v280 = vld [vmem:[#allocation6 + $0x4] sm:$0xf]
    %v281 = vld [vmem:[#allocation6 + $0x8] sm:$0xf]
    %v282 = vld [vmem:[#allocation6 + $0xc] sm:$0xf]
    %v283 = vld [vmem:[#allocation7] sm:$0xff]
    %v284 = vld [vmem:[#allocation7 + $0x8] sm:$0xff]
    %v285 = vld [vmem:[#allocation7 + $0x10] sm:$0xff]
    %v286 = vld [vmem:[#allocation7 + $0x18] sm:$0xff]
    %v287 = vld [vmem:[#allocation10] sm:$0xff]
    %v288 = vld [vmem:[#allocation10 + $0x8] sm:$0xff]
    %v289 = vld [vmem:[#allocation10 + $0x10] sm:$0xff]
    %v290 = vld [vmem:[#allocation10 + $0x18] sm:$0xff]
    %s291 = sld [smem:[#allocation2]]
    %s292 = sld [smem:[#allocation2 + $0x1]]
    %s293 = sld [smem:[#allocation2 + $0x2]]
    %v294 = vld [vmem:[#allocation12] sm:$0xff]
    %v295 = vld [vmem:[#allocation12 + $0x8] sm:$0xff]
    %v296 = vld [vmem:[#allocation12 + $0x10] sm:$0xff]
    %v297 = vld [vmem:[#allocation12 + $0x18] sm:$0xff]
    %v298 = vld [vmem:[#allocation12 + $0x20] sm:$0xff]
    %v299 = vld [vmem:[#allocation12 + $0x28] sm:$0xff]
    %v300 = vld [vmem:[#allocation12 + $0x30] sm:$0xff]
    %v301 = vld [vmem:[#allocation12 + $0x38] sm:$0xff]
    %v302 = vld [vmem:[#allocation12 + $0x40] sm:$0xff]
    %v303 = vld [vmem:[#allocation12 + $0x48] sm:$0xff]
    %v304 = vld [vmem:[#allocation12 + $0x50] sm:$0xff]
    %v305 = vld [vmem:[#allocation12 + $0x58] sm:$0xff]
    %v306 = vld [vmem:[#allocation12 + $0x60] sm:$0xff]
    %v307 = vld [vmem:[#allocation12 + $0x68] sm:$0xff]
    %v308 = vld [vmem:[#allocation12 + $0x70] sm:$0xff]
    %v309 = vld [vmem:[#allocation12 + $0x78] sm:$0xff]
    %v310 = vld [vmem:[#allocation13] sm:$0x1]
    %311 = vmatprep.subr.mxu0 0.0
    %312 = vmatpush1.msra.mxu0 %v294
    %313 = vmatprep.subr.mxu0 0.0
    %314 = vmatpush1.msra.mxu0 %v295
    %315 = vmatprep.subr.mxu0 0.0
    %316 = vmatpush1.msra.mxu0 %v296
    %317 = vmatprep.subr.mxu0 0.0
    %318 = vmatpush1.msra.mxu0 %v297
    %319 = vmatprep.subr.mxu0 0.0
    %320 = vmatpush1.msra.mxu0 %v298
    %321 = vmatprep.subr.mxu0 0.0
    %322 = vmatpush1.msra.mxu0 %v299
    %323 = vmatprep.subr.mxu0 0.0
    %324 = vmatpush1.msra.mxu0 %v300
    %325 = vmatprep.subr.mxu0 0.0
    %326 = vmatpush1.msra.mxu0 %v301
    %327 = vmatprep.subr.mxu0 0.0
    %328 = vmatpush1.msra.mxu0 %v302
    %329 = vmatprep.subr.mxu0 0.0
    %330 = vmatpush1.msra.mxu0 %v303
    %331 = vmatprep.subr.mxu0 0.0
    %332 = vmatpush1.msra.mxu0 %v304
    %333 = vmatprep.subr.mxu0 0.0
    %334 = vmatpush1.msra.mxu0 %v305
    %335 = vmatprep.subr.mxu0 0.0
    %336 = vmatpush1.msra.mxu0 %v306
    %337 = vmatprep.subr.mxu0 0.0
    %338 = vmatpush1.msra.mxu0 %v307
    %339 = vmatprep.subr.mxu0 0.0
    %340 = vmatpush1.msra.mxu0 %v308
    %341 = vmatprep.subr.mxu0 0.0
    %342 = vmatpush1.msra.mxu0 %v309
    %343 = vmatprep.subr.mxu0 0.0
    %344 = vmatpush1.msra.mxu0 0.0
    %345 = vmatprep.subr.mxu0 0.0
    %346 = vmatpush1.msra.mxu0 0.0
    %347 = vmatprep.subr.mxu0 0.0
    %348 = vmatpush1.msra.mxu0 0.0
    %349 = vmatprep.subr.mxu0 0.0
    %350 = vmatpush1.msra.mxu0 0.0
    %351 = vmatprep.subr.mxu0 0.0
    %352 = vmatpush1.msra.mxu0 0.0
    %353 = vmatprep.subr.mxu0 0.0
    %354 = vmatpush1.msra.mxu0 0.0
    %355 = vmatprep.subr.mxu0 0.0
    %356 = vmatpush1.msra.mxu0 0.0
    %357 = vmatprep.subr.mxu0 0.0
    %358 = vmatpush1.msra.mxu0 0.0
    %359 = vmatprep.subr.mxu0 0.0
    %360 = vmatpush1.msra.mxu0 0.0
    %361 = vmatprep.subr.mxu0 0.0
    %362 = vmatpush1.msra.mxu0 0.0
    %363 = vmatprep.subr.mxu0 0.0
    %364 = vmatpush1.msra.mxu0 0.0
    %365 = vmatprep.subr.mxu0 0.0
    %366 = vmatpush1.msra.mxu0 0.0
    %367 = vmatprep.subr.mxu0 0.0
    %368 = vmatpush1.msra.mxu0 0.0
    %369 = vmatprep.subr.mxu0 0.0
    %370 = vmatpush1.msra.mxu0 0.0
    %371 = vmatprep.subr.mxu0 0.0
    %372 = vmatpush1.msra.mxu0 0.0
    %373 = vmatprep.subr.mxu0 0.0
    %374 = vmatpush1.msra.mxu0 0.0
    %375 = vmatprep.mubr.f32.mxu0 0.0
    %376 = vmatmul.mubr.f32.gmra.mrb[0].mxu0 %v287
    %v377 = vpop.f32.mrb[0].mxu0
    %v378 = vadd.f32 0.0, %v377
    %v379 = vpop.f32.mrb[0].mxu0
    %380 = vmatprep.mubr.f32.mxu0 0.0
    %381 = vmatmul.mubr.f32.gmra.mrb[0].mxu0 %v288
    %v382 = vpop.f32.mrb[0].mxu0
    %v383 = vadd.f32 0.0, %v382
    %v384 = vpop.f32.mrb[0].mxu0
    %385 = vmatprep.mubr.f32.mxu0 0.0
    %386 = vmatmul.mubr.f32.gmra.mrb[0].mxu0 %v289
    %v387 = vpop.f32.mrb[0].mxu0
    %v388 = vadd.f32 0.0, %v387
    %v389 = vpop.f32.mrb[0].mxu0
    %390 = vmatprep.mubr.f32.mxu0 0.0
    %391 = vmatmul.mubr.f32.gmra.mrb[0].mxu0 %v290
    %v392 = vpop.f32.mrb[0].mxu0
    %v393 = vadd.f32 0.0, %v392
    %v394 = vpop.f32.mrb[0].mxu0
    %395 = vdwg.mxu0
    %v396 = vpack.c.bf16 %v383, %v378
    %v397 = vpack.c.bf16 %v393, %v388
    %v402 = vunpack.c.l.b16 %v279
    %v403 = vunpack.c.l.b16 %v280
    %v404 = vunpack.c.l.b16 %v281
    %v405 = vunpack.c.l.b16 %v282
    %v406 = vpack.c.b16 %v403, %v402
    %v407 = vpack.c.b16 %v405, %v404
    %410 = vxpose.xlu0.c.b16.start [1/8] %v406, 128
    %411 = vxpose.xlu0.c.b16.cont [2/8] %v407, 128
    %412 = vxpose.xlu0.c.b16.cont [3/8] 0, 128
    %413 = vxpose.xlu0.c.b16.cont [4/8] 0, 128
    %414 = vxpose.xlu0.c.b16.cont [5/8] 0, 128
    %415 = vxpose.xlu0.c.b16.cont [6/8] 0, 128
    %416 = vxpose.xlu0.c.b16.cont [7/8] 0, 128
    %417 = vxpose.xlu0.c.b16.end [8/8] 0, 128
    %v418 = vpop.trf.xlu0
    %v419 = vpop.trf.xlu0
    %v420 = vpop.trf.xlu0
    %v421 = vpop.trf.xlu0
    %v422 = vpop.trf.xlu0
    %v423 = vpop.trf.xlu0
    %v424 = vpop.trf.xlu0
    %v425 = vpop.trf.xlu0
    %vm426 = vcmask 261120
    %v428 = vsel %vm426, %v418, 0
    %v431 = vsel %vm426, %v419, 0
    %433 = vmatprep.subr.bf16.mxu0 0
    %434 = vmatpush1.bf16.msra.mxu0 %v396
    %435 = vmatprep.subr.bf16.mxu0 0
    %436 = vmatpush1.bf16.msra.mxu0 %v397
    %437 = vmatprep.subr.bf16.mxu0 0
    %438 = vmatpush1.bf16.msra.mxu0 0
    %439 = vmatprep.subr.bf16.mxu0 0
    %440 = vmatpush1.bf16.msra.mxu0 0
    %441 = vmatprep.subr.bf16.mxu0 0
    %442 = vmatpush1.bf16.msra.mxu0 0
    %443 = vmatprep.subr.bf16.mxu0 0
    %444 = vmatpush1.bf16.msra.mxu0 0
    %445 = vmatprep.subr.bf16.mxu0 0
    %446 = vmatpush1.bf16.msra.mxu0 0
    %447 = vmatprep.subr.bf16.mxu0 0
    %448 = vmatpush1.bf16.msra.mxu0 0
    %449 = vmatprep.subr.bf16.mxu0 0
    %450 = vmatpush1.bf16.msra.mxu0 0
    %451 = vmatprep.subr.bf16.mxu0 0
    %452 = vmatpush1.bf16.msra.mxu0 0
    %453 = vmatprep.subr.bf16.mxu0 0
    %454 = vmatpush1.bf16.msra.mxu0 0
    %455 = vmatprep.subr.bf16.mxu0 0
    %456 = vmatpush1.bf16.msra.mxu0 0
    %457 = vmatprep.subr.bf16.mxu0 0
    %458 = vmatpush1.bf16.msra.mxu0 0
    %459 = vmatprep.subr.bf16.mxu0 0
    %460 = vmatpush1.bf16.msra.mxu0 0
    %461 = vmatprep.subr.bf16.mxu0 0
    %462 = vmatpush1.bf16.msra.mxu0 0
    %463 = vmatprep.subr.bf16.mxu0 0
    %464 = vmatpush1.bf16.msra.mxu0 0
    %465 = vmatprep.mubr.bf16.mxu0 0
    %466 = vmatmul.mubr.bf16.gmra.mrb[0].mxu0 %v428
    %v467 = vpop.f32.mrb[0].mxu0
    %v468 = vadd.f32 %v378, %v467
    %v469 = vpop.f32.mrb[0].mxu0
    %v470 = vpop.f32.mrb[0].mxu0
    %v471 = vadd.f32 %v383, %v470
    %v472 = vpop.f32.mrb[0].mxu0
    %473 = vmatprep.mubr.bf16.mxu0 0
    %474 = vmatmul.mubr.bf16.gmra.mrb[0].mxu0 %v431
    %v475 = vpop.f32.mrb[0].mxu0
    %v476 = vadd.f32 %v388, %v475
    %v477 = vpop.f32.mrb[0].mxu0
    %v478 = vpop.f32.mrb[0].mxu0
    %v479 = vadd.f32 %v393, %v478
    %v480 = vpop.f32.mrb[0].mxu0
    %481 = vdwg.mxu0
    %483 = vset.pattern.permute.xlu0 0
    %484 = vperm.xlu0 %483, %v283
    %v485 = vpop.permute.xlu0 %484
    %488 = vset.pattern.permute.xlu0 0
    %489 = vperm.xlu0 %488, %v284
    %v490 = vpop.permute.xlu0 %489
    %493 = vset.pattern.permute.xlu0 0
    %494 = vperm.xlu0 %493, %v285
    %v495 = vpop.permute.xlu0 %494
    %498 = vset.pattern.permute.xlu0 0
    %499 = vperm.xlu0 %498, %v286
    %v500 = vpop.permute.xlu0 %499
    %v502 = vmul.f32 %v468, %v485
    %v503 = vmul.f32 %v471, %v490
    %v504 = vmul.f32 %v476, %v495
    %v505 = vmul.f32 %v479, %v500
    %v507 = vlaneseq
    %v508 = vshrl.u32 %v507, 7
    %v509 = vsub.s32 0, %v508
    %v510 = vrot.slane %v310, %v509
    %v512 = vadd.f32 %v502, %v510
    %v513 = vadd.f32 %v503, %v510
    %v514 = vadd.f32 %v504, %v510
    %v515 = vadd.f32 %v505, %v510
    %v516 = vmax.f32 %v512, 0.0
    %v517 = vmax.f32 %v513, 0.0
    %v518 = vmax.f32 %v514, 0.0
    %v519 = vmax.f32 %v515, 0.0
    %v520 = vld [vmem:[#allocation15] sm:$0xff]
    %v521 = vld [vmem:[#allocation15 + $0x8] sm:$0xff]
    %v522 = vld [vmem:[#allocation15 + $0x10] sm:$0xff]
    %v523 = vld [vmem:[#allocation15 + $0x18] sm:$0xff]
    %v524 = vld [vmem:[#allocation15 + $0x20] sm:$0xff]
    %v525 = vld [vmem:[#allocation15 + $0x28] sm:$0xff]
    %v526 = vld [vmem:[#allocation15 + $0x30] sm:$0xff]
    %v527 = vld [vmem:[#allocation15 + $0x38] sm:$0xff]
    %v528 = vld [vmem:[#allocation15 + $0x40] sm:$0xff]
    %v529 = vld [vmem:[#allocation15 + $0x48] sm:$0xff]
    %v530 = vld [vmem:[#allocation15 + $0x50] sm:$0xff]
    %v531 = vld [vmem:[#allocation15 + $0x58] sm:$0xff]
    %v532 = vld [vmem:[#allocation15 + $0x60] sm:$0xff]
    %v533 = vld [vmem:[#allocation15 + $0x68] sm:$0xff]
    %v534 = vld [vmem:[#allocation15 + $0x70] sm:$0xff]
    %v535 = vld [vmem:[#allocation15 + $0x78] sm:$0xff]
    %v536 = vld [vmem:[#allocation16] sm:$0x1]
    %537 = vmatprep.subr.mxu0 0.0
    %538 = vmatpush1.msra.mxu0 %v520
    %539 = vmatprep.subr.mxu0 0.0
    %540 = vmatpush1.msra.mxu0 %v521
    %541 = vmatprep.subr.mxu0 0.0
    %542 = vmatpush1.msra.mxu0 %v522
    %543 = vmatprep.subr.mxu0 0.0
    %544 = vmatpush1.msra.mxu0 %v523
    %545 = vmatprep.subr.mxu0 0.0
    %546 = vmatpush1.msra.mxu0 %v524
    %547 = vmatprep.subr.mxu0 0.0
    %548 = vmatpush1.msra.mxu0 %v525
    %549 = vmatprep.subr.mxu0 0.0
    %550 = vmatpush1.msra.mxu0 %v526
    %551 = vmatprep.subr.mxu0 0.0
    %552 = vmatpush1.msra.mxu0 %v527
    %553 = vmatprep.subr.mxu0 0.0
    %554 = vmatpush1.msra.mxu0 %v528
    %555 = vmatprep.subr.mxu0 0.0
    %556 = vmatpush1.msra.mxu0 %v529
    %557 = vmatprep.subr.mxu0 0.0
    %558 = vmatpush1.msra.mxu0 %v530
    %559 = vmatprep.subr.mxu0 0.0
    %560 = vmatpush1.msra.mxu0 %v531
    %561 = vmatprep.subr.mxu0 0.0
    %562 = vmatpush1.msra.mxu0 %v532
    %563 = vmatprep.subr.mxu0 0.0
    %564 = vmatpush1.msra.mxu0 %v533
    %565 = vmatprep.subr.mxu0 0.0
    %566 = vmatpush1.msra.mxu0 %v534
    %567 = vmatprep.subr.mxu0 0.0
    %568 = vmatpush1.msra.mxu0 %v535
    %569 = vmatprep.subr.mxu0 0.0
    %570 = vmatpush1.msra.mxu0 0.0
    %571 = vmatprep.subr.mxu0 0.0
    %572 = vmatpush1.msra.mxu0 0.0
    %573 = vmatprep.subr.mxu0 0.0
    %574 = vmatpush1.msra.mxu0 0.0
    %575 = vmatprep.subr.mxu0 0.0
    %576 = vmatpush1.msra.mxu0 0.0
    %577 = vmatprep.subr.mxu0 0.0
    %578 = vmatpush1.msra.mxu0 0.0
    %579 = vmatprep.subr.mxu0 0.0
    %580 = vmatpush1.msra.mxu0 0.0
    %581 = vmatprep.subr.mxu0 0.0
    %582 = vmatpush1.msra.mxu0 0.0
    %583 = vmatprep.subr.mxu0 0.0
    %584 = vmatpush1.msra.mxu0 0.0
    %585 = vmatprep.subr.mxu0 0.0
    %586 = vmatpush1.msra.mxu0 0.0
    %587 = vmatprep.subr.mxu0 0.0
    %588 = vmatpush1.msra.mxu0 0.0
    %589 = vmatprep.subr.mxu0 0.0
    %590 = vmatpush1.msra.mxu0 0.0
    %591 = vmatprep.subr.mxu0 0.0
    %592 = vmatpush1.msra.mxu0 0.0
    %593 = vmatprep.subr.mxu0 0.0
    %594 = vmatpush1.msra.mxu0 0.0
    %595 = vmatprep.subr.mxu0 0.0
    %596 = vmatpush1.msra.mxu0 0.0
    %597 = vmatprep.subr.mxu0 0.0
    %598 = vmatpush1.msra.mxu0 0.0
    %599 = vmatprep.subr.mxu0 0.0
    %600 = vmatpush1.msra.mxu0 0.0
    %601 = vmatprep.mubr.f32.mxu0 0.0
    %602 = vmatmul.mubr.f32.gmra.mrb[0].mxu0 %v516
    %v603 = vpop.f32.mrb[0].mxu0
    %v604 = vadd.f32 0.0, %v603
    %v605 = vpop.f32.mrb[0].mxu0
    %606 = vmatprep.mubr.f32.mxu0 0.0
    %607 = vmatmul.mubr.f32.gmra.mrb[0].mxu0 %v517
    %v608 = vpop.f32.mrb[0].mxu0
    %v609 = vadd.f32 0.0, %v608
    %v610 = vpop.f32.mrb[0].mxu0
    %611 = vmatprep.mubr.f32.mxu0 0.0
    %612 = vmatmul.mubr.f32.gmra.mrb[0].mxu0 %v518
    %v613 = vpop.f32.mrb[0].mxu0
    %v614 = vadd.f32 0.0, %v613
    %v615 = vpop.f32.mrb[0].mxu0
    %616 = vmatprep.mubr.f32.mxu0 0.0
    %617 = vmatmul.mubr.f32.gmra.mrb[0].mxu0 %v519
    %v618 = vpop.f32.mrb[0].mxu0
    %v619 = vadd.f32 0.0, %v618
    %v620 = vpop.f32.mrb[0].mxu0
    %621 = vdwg.mxu0
    %v622 = vpack.c.bf16 %v609, %v604
    %v623 = vpack.c.bf16 %v619, %v614
    %624 = vmatprep.subr.bf16.mxu0 0
    %625 = vmatpush1.bf16.msra.mxu0 %v622
    %626 = vmatprep.subr.bf16.mxu0 0
    %627 = vmatpush1.bf16.msra.mxu0 %v623
    %628 = vmatprep.subr.bf16.mxu0 0
    %629 = vmatpush1.bf16.msra.mxu0 0
    %630 = vmatprep.subr.bf16.mxu0 0
    %631 = vmatpush1.bf16.msra.mxu0 0
    %632 = vmatprep.subr.bf16.mxu0 0
    %633 = vmatpush1.bf16.msra.mxu0 0
    %634 = vmatprep.subr.bf16.mxu0 0
    %635 = vmatpush1.bf16.msra.mxu0 0
    %636 = vmatprep.subr.bf16.mxu0 0
    %637 = vmatpush1.bf16.msra.mxu0 0
    %638 = vmatprep.subr.bf16.mxu0 0
    %639 = vmatpush1.bf16.msra.mxu0 0
    %640 = vmatprep.subr.bf16.mxu0 0
    %641 = vmatpush1.bf16.msra.mxu0 0
    %642 = vmatprep.subr.bf16.mxu0 0
    %643 = vmatpush1.bf16.msra.mxu0 0
    %644 = vmatprep.subr.bf16.mxu0 0
    %645 = vmatpush1.bf16.msra.mxu0 0
    %646 = vmatprep.subr.bf16.mxu0 0
    %647 = vmatpush1.bf16.msra.mxu0 0
    %648 = vmatprep.subr.bf16.mxu0 0
    %649 = vmatpush1.bf16.msra.mxu0 0
    %650 = vmatprep.subr.bf16.mxu0 0
    %651 = vmatpush1.bf16.msra.mxu0 0
    %652 = vmatprep.subr.bf16.mxu0 0
    %653 = vmatpush1.bf16.msra.mxu0 0
    %654 = vmatprep.subr.bf16.mxu0 0
    %655 = vmatpush1.bf16.msra.mxu0 0
    %656 = vmatprep.mubr.bf16.mxu0 0
    %657 = vmatmul.mubr.bf16.gmra.mrb[0].mxu0 %v428
    %v658 = vpop.f32.mrb[0].mxu0
    %v659 = vadd.f32 %v604, %v658
    %v660 = vpop.f32.mrb[0].mxu0
    %v661 = vpop.f32.mrb[0].mxu0
    %v662 = vadd.f32 %v609, %v661
    %v663 = vpop.f32.mrb[0].mxu0
    %664 = vmatprep.mubr.bf16.mxu0 0
    %665 = vmatmul.mubr.bf16.gmra.mrb[0].mxu0 %v431
    %v666 = vpop.f32.mrb[0].mxu0
    %v667 = vadd.f32 %v614, %v666
    %v668 = vpop.f32.mrb[0].mxu0
    %v669 = vpop.f32.mrb[0].mxu0
    %v670 = vadd.f32 %v619, %v669
    %v671 = vpop.f32.mrb[0].mxu0
    %672 = vdwg.mxu0
    %v673 = vmul.f32 %v659, %v485
    %v674 = vmul.f32 %v662, %v490
    %v675 = vmul.f32 %v667, %v495
    %v676 = vmul.f32 %v670, %v500
    %v678 = vlaneseq
    %v679 = vshrl.u32 %v678, 7
    %v680 = vsub.s32 0, %v679
    %v681 = vrot.slane %v536, %v680
    %v683 = vadd.f32 %v673, %v681
    %v684 = vadd.f32 %v674, %v681
    %v685 = vadd.f32 %v675, %v681
    %v686 = vadd.f32 %v676, %v681
    %v687 = vmax.f32 %v683, 0.0
    %v688 = vmax.f32 %v684, 0.0
    %v689 = vmax.f32 %v685, 0.0
    %v690 = vmax.f32 %v686, 0.0
    %v691 = vld [vmem:[#allocation18] sm:$0xff]
    %v692 = vld [vmem:[#allocation18 + $0x8] sm:$0xff]
    %v693 = vld [vmem:[#allocation18 + $0x10] sm:$0xff]
    %v694 = vld [vmem:[#allocation18 + $0x18] sm:$0xff]
    %v695 = vld [vmem:[#allocation18 + $0x20] sm:$0xff]
    %v696 = vld [vmem:[#allocation18 + $0x28] sm:$0xff]
    %v697 = vld [vmem:[#allocation18 + $0x30] sm:$0xff]
    %v698 = vld [vmem:[#allocation18 + $0x38] sm:$0xff]
    %v699 = vld [vmem:[#allocation18 + $0x40] sm:$0xff]
    %v700 = vld [vmem:[#allocation18 + $0x48] sm:$0xff]
    %v701 = vld [vmem:[#allocation18 + $0x50] sm:$0xff]
    %v702 = vld [vmem:[#allocation18 + $0x58] sm:$0xff]
    %v703 = vld [vmem:[#allocation18 + $0x60] sm:$0xff]
    %v704 = vld [vmem:[#allocation18 + $0x68] sm:$0xff]
    %v705 = vld [vmem:[#allocation18 + $0x70] sm:$0xff]
    %v706 = vld [vmem:[#allocation18 + $0x78] sm:$0xff]
    %v707 = vld [vmem:[#allocation19] sm:$0x1]
    %708 = vmatprep.subr.mxu0 0.0
    %709 = vmatpush1.msra.mxu0 %v691
    %710 = vmatprep.subr.mxu0 0.0
    %711 = vmatpush1.msra.mxu0 %v692
    %712 = vmatprep.subr.mxu0 0.0
    %713 = vmatpush1.msra.mxu0 %v693
    %714 = vmatprep.subr.mxu0 0.0
    %715 = vmatpush1.msra.mxu0 %v694
    %716 = vmatprep.subr.mxu0 0.0
    %717 = vmatpush1.msra.mxu0 %v695
    %718 = vmatprep.subr.mxu0 0.0
    %719 = vmatpush1.msra.mxu0 %v696
    %720 = vmatprep.subr.mxu0 0.0
    %721 = vmatpush1.msra.mxu0 %v697
    %722 = vmatprep.subr.mxu0 0.0
    %723 = vmatpush1.msra.mxu0 %v698
    %724 = vmatprep.subr.mxu0 0.0
    %725 = vmatpush1.msra.mxu0 %v699
    %726 = vmatprep.subr.mxu0 0.0
    %727 = vmatpush1.msra.mxu0 %v700
    %728 = vmatprep.subr.mxu0 0.0
    %729 = vmatpush1.msra.mxu0 %v701
    %730 = vmatprep.subr.mxu0 0.0
    %731 = vmatpush1.msra.mxu0 %v702
    %732 = vmatprep.subr.mxu0 0.0
    %733 = vmatpush1.msra.mxu0 %v703
    %734 = vmatprep.subr.mxu0 0.0
    %735 = vmatpush1.msra.mxu0 %v704
    %736 = vmatprep.subr.mxu0 0.0
    %737 = vmatpush1.msra.mxu0 %v705
    %738 = vmatprep.subr.mxu0 0.0
    %739 = vmatpush1.msra.mxu0 %v706
    %740 = vmatprep.subr.mxu0 0.0
    %741 = vmatpush1.msra.mxu0 0.0
    %742 = vmatprep.subr.mxu0 0.0
    %743 = vmatpush1.msra.mxu0 0.0
    %744 = vmatprep.subr.mxu0 0.0
    %745 = vmatpush1.msra.mxu0 0.0
    %746 = vmatprep.subr.mxu0 0.0
    %747 = vmatpush1.msra.mxu0 0.0
    %748 = vmatprep.subr.mxu0 0.0
    %749 = vmatpush1.msra.mxu0 0.0
    %750 = vmatprep.subr.mxu0 0.0
    %751 = vmatpush1.msra.mxu0 0.0
    %752 = vmatprep.subr.mxu0 0.0
    %753 = vmatpush1.msra.mxu0 0.0
    %754 = vmatprep.subr.mxu0 0.0
    %755 = vmatpush1.msra.mxu0 0.0
    %756 = vmatprep.subr.mxu0 0.0
    %757 = vmatpush1.msra.mxu0 0.0
    %758 = vmatprep.subr.mxu0 0.0
    %759 = vmatpush1.msra.mxu0 0.0
    %760 = vmatprep.subr.mxu0 0.0
    %761 = vmatpush1.msra.mxu0 0.0
    %762 = vmatprep.subr.mxu0 0.0
    %763 = vmatpush1.msra.mxu0 0.0
    %764 = vmatprep.subr.mxu0 0.0
    %765 = vmatpush1.msra.mxu0 0.0
    %766 = vmatprep.subr.mxu0 0.0
    %767 = vmatpush1.msra.mxu0 0.0
    %768 = vmatprep.subr.mxu0 0.0
    %769 = vmatpush1.msra.mxu0 0.0
    %770 = vmatprep.subr.mxu0 0.0
    %771 = vmatpush1.msra.mxu0 0.0
    %772 = vmatprep.mubr.f32.mxu0 0.0
    %773 = vmatmul.mubr.f32.gmra.mrb[0].mxu0 %v687
    %v774 = vpop.f32.mrb[0].mxu0
    %v775 = vadd.f32 0.0, %v774
    %v776 = vpop.f32.mrb[0].mxu0
    %777 = vmatprep.mubr.f32.mxu0 0.0
    %778 = vmatmul.mubr.f32.gmra.mrb[0].mxu0 %v688
    %v779 = vpop.f32.mrb[0].mxu0
    %v780 = vadd.f32 0.0, %v779
    %v781 = vpop.f32.mrb[0].mxu0
    %782 = vmatprep.mubr.f32.mxu0 0.0
    %783 = vmatmul.mubr.f32.gmra.mrb[0].mxu0 %v689
    %v784 = vpop.f32.mrb[0].mxu0
    %v785 = vadd.f32 0.0, %v784
    %v786 = vpop.f32.mrb[0].mxu0
    %787 = vmatprep.mubr.f32.mxu0 0.0
    %788 = vmatmul.mubr.f32.gmra.mrb[0].mxu0 %v690
    %v789 = vpop.f32.mrb[0].mxu0
    %v790 = vadd.f32 0.0, %v789
    %v791 = vpop.f32.mrb[0].mxu0
    %792 = vdwg.mxu0
    %v793 = vpack.c.bf16 %v780, %v775
    %v794 = vpack.c.bf16 %v790, %v785
    %795 = vmatprep.subr.bf16.mxu0 0
    %796 = vmatpush1.bf16.msra.mxu0 %v793
    %797 = vmatprep.subr.bf16.mxu0 0
    %798 = vmatpush1.bf16.msra.mxu0 %v794
    %799 = vmatprep.subr.bf16.mxu0 0
    %800 = vmatpush1.bf16.msra.mxu0 0
    %801 = vmatprep.subr.bf16.mxu0 0
    %802 = vmatpush1.bf16.msra.mxu0 0
    %803 = vmatprep.subr.bf16.mxu0 0
    %804 = vmatpush1.bf16.msra.mxu0 0
    %805 = vmatprep.subr.bf16.mxu0 0
    %806 = vmatpush1.bf16.msra.mxu0 0
    %807 = vmatprep.subr.bf16.mxu0 0
    %808 = vmatpush1.bf16.msra.mxu0 0
    %809 = vmatprep.subr.bf16.mxu0 0
    %810 = vmatpush1.bf16.msra.mxu0 0
    %811 = vmatprep.subr.bf16.mxu0 0
    %812 = vmatpush1.bf16.msra.mxu0 0
    %813 = vmatprep.subr.bf16.mxu0 0
    %814 = vmatpush1.bf16.msra.mxu0 0
    %815 = vmatprep.subr.bf16.mxu0 0
    %816 = vmatpush1.bf16.msra.mxu0 0
    %817 = vmatprep.subr.bf16.mxu0 0
    %818 = vmatpush1.bf16.msra.mxu0 0
    %819 = vmatprep.subr.bf16.mxu0 0
    %820 = vmatpush1.bf16.msra.mxu0 0
    %821 = vmatprep.subr.bf16.mxu0 0
    %822 = vmatpush1.bf16.msra.mxu0 0
    %823 = vmatprep.subr.bf16.mxu0 0
    %824 = vmatpush1.bf16.msra.mxu0 0
    %825 = vmatprep.subr.bf16.mxu0 0
    %826 = vmatpush1.bf16.msra.mxu0 0
    %827 = vmatprep.mubr.bf16.mxu0 0
    %828 = vmatmul.mubr.bf16.gmra.mrb[0].mxu0 %v428
    %v829 = vpop.f32.mrb[0].mxu0
    %v830 = vadd.f32 %v775, %v829
    %v831 = vpop.f32.mrb[0].mxu0
    %v832 = vpop.f32.mrb[0].mxu0
    %v833 = vadd.f32 %v780, %v832
    %v834 = vpop.f32.mrb[0].mxu0
    %835 = vmatprep.mubr.bf16.mxu0 0
    %836 = vmatmul.mubr.bf16.gmra.mrb[0].mxu0 %v431
    %v837 = vpop.f32.mrb[0].mxu0
    %v838 = vadd.f32 %v785, %v837
    %v839 = vpop.f32.mrb[0].mxu0
    %v840 = vpop.f32.mrb[0].mxu0
    %v841 = vadd.f32 %v790, %v840
    %v842 = vpop.f32.mrb[0].mxu0
    %843 = vdwg.mxu0
    %v844 = vmul.f32 %v830, %v485
    %v845 = vmul.f32 %v833, %v490
    %v846 = vmul.f32 %v838, %v495
    %v847 = vmul.f32 %v841, %v500
    %v849 = vlaneseq
    %v850 = vshrl.u32 %v849, 7
    %v851 = vsub.s32 0, %v850
    %v852 = vrot.slane %v707, %v851
    %v854 = vadd.f32 %v844, %v852
    %v855 = vadd.f32 %v845, %v852
    %v856 = vadd.f32 %v846, %v852
    %v857 = vadd.f32 %v847, %v852
    %v858 = vlaneseq
    %v859 = vand.u32 %v858, 127
    %vm860 = vcmp.lt.s32.totalorder %v859, 2
    %v861 = vsel %vm860, %v854, -1e+30
    %v862 = vsel %vm860, %v855, -1e+30
    %v863 = vsel %vm860, %v856, -1e+30
    %v864 = vsel %vm860, %v857, -1e+30
    %865 = vmax.xlane.f32.xlu0 %v861
    %v866 = vpop.xlane.xlu0 %865
    %867 = vmax.xlane.f32.xlu0 %v862
    %v868 = vpop.xlane.xlu0 %867
    %869 = vmax.xlane.f32.xlu0 %v863
    %v870 = vpop.xlane.xlu0 %869
    %871 = vmax.xlane.f32.xlu0 %v864
    %v872 = vpop.xlane.xlu0 %871
    %v873 = vsub.f32 %v861, %v866
    %v874 = vsub.f32 %v862, %v868
    %v875 = vsub.f32 %v863, %v870
    %v876 = vsub.f32 %v864, %v872
    %v877 = vmul.f32 %v873, 1.442695
    %v878 = vpow.pop %v877
    %v879 = vmul.f32 %v874, 1.442695
    %v880 = vpow.pop %v879
    %v881 = vmul.f32 %v875, 1.442695
    %v882 = vpow.pop %v881
    %v883 = vmul.f32 %v876, 1.442695
    %v884 = vpow.pop %v883
    %885 = vadd.xlane.f32.xlu0 %v878
    %v886 = vpop.xlane.xlu0 %885
    %887 = vadd.xlane.f32.xlu0 %v880
    %v888 = vpop.xlane.xlu0 %887
    %889 = vadd.xlane.f32.xlu0 %v882
    %v890 = vpop.xlane.xlu0 %889
    %891 = vadd.xlane.f32.xlu0 %v884
    %v892 = vpop.xlane.xlu0 %891
    %v893 = vsub.f32 %v854, %v866
    %v894 = vsub.f32 %v855, %v868
    %v895 = vsub.f32 %v856, %v870
    %v896 = vsub.f32 %v857, %v872
    %v897 = vlog2.pop %v886
    %v898 = vmul.f32 %v897, 0.6931472
    %v899 = vlog2.pop %v888
    %v900 = vmul.f32 %v899, 0.6931472
    %v901 = vlog2.pop %v890
    %v902 = vmul.f32 %v901, 0.6931472
    %v903 = vlog2.pop %v892
    %v904 = vmul.f32 %v903, 0.6931472
    %v905 = vsub.f32 %v893, %v898
    %v906 = vsub.f32 %v894, %v900
    %v907 = vsub.f32 %v895, %v902
    %v908 = vsub.f32 %v896, %v904
    %v909 = vsel %vm860, %v905, 0.0
    %v910 = vsel %vm860, %v906, 0.0
    %v911 = vsel %vm860, %v907, 0.0
    %v912 = vsel %vm860, %v908, 0.0
    %913 = vst [vmem:[#allocation30] sm:$0xff] %v909
    %914 = vst [vmem:[#allocation30 + $0x8] sm:$0xff] %v910
    %915 = vst [vmem:[#allocation30 + $0x10] sm:$0xff] %v911
    %916 = vst [vmem:[#allocation30 + $0x18] sm:$0xff] %v912
    %917 = vst [vmem:[#allocation31] sm:$0xff] %v854
    %918 = vst [vmem:[#allocation31 + $0x8] sm:$0xff] %v855
    %919 = vst [vmem:[#allocation31 + $0x10] sm:$0xff] %v856
    %920 = vst [vmem:[#allocation31 + $0x18] sm:$0xff] %v857
    %921 = vst [vmem:[#allocation33] sm:$0xff] %v909
    %922 = vst [vmem:[#allocation33 + $0x8] sm:$0xff] %v910
    %923 = vst [vmem:[#allocation33 + $0x10] sm:$0xff] %v911
    %924 = vst [vmem:[#allocation33 + $0x18] sm:$0xff] %v912
    %925 = vst [vmem:[#allocation34] sm:$0xff] %v854
    %926 = vst [vmem:[#allocation34 + $0x8] sm:$0xff] %v855
    %927 = vst [vmem:[#allocation34 + $0x10] sm:$0xff] %v856
    %928 = vst [vmem:[#allocation34 + $0x18] sm:$0xff] %v857
    %929 = vst [vmem:[#allocation36] sm:$0xff] %v909
    %930 = vst [vmem:[#allocation36 + $0x8] sm:$0xff] %v910
    %931 = vst [vmem:[#allocation36 + $0x10] sm:$0xff] %v911
    %932 = vst [vmem:[#allocation36 + $0x18] sm:$0xff] %v912
    %p933 = scmp.gt.f32.partialorder %s292, 0.5
    // Predicated region
    $region138: #{_gnn_forward_jit.1} parent=1 // pred_check
      %p934 = pneg %p933
    $region139: #{_gnn_forward_jit.1} parent=1 // pred_check_branch
      %936 = sbr.rel (%p934) target = $region141
    $region140: #{_gnn_forward_jit.1} parent=1 // pred_region
      %v937 = vld [vmem:[#allocation9] sm:$0x1]
      %v939 = vsel %vm426, %v937, 0
      %941 = vmatprep.subr.mxu0 0.0
      %942 = vmatpush1.msra.mxu0 %v854
      %943 = vmatprep.subr.mxu0 0.0
      %944 = vmatpush1.msra.mxu0 %v855
      %945 = vmatprep.subr.mxu0 0.0
      %946 = vmatpush1.msra.mxu0 %v856
      %947 = vmatprep.subr.mxu0 0.0
      %948 = vmatpush1.msra.mxu0 %v857
      %949 = vmatprep.subr.mxu0 0.0
      %950 = vmatpush1.msra.mxu0 0.0
      %951 = vmatprep.subr.mxu0 0.0
      %952 = vmatpush1.msra.mxu0 0.0
      %953 = vmatprep.subr.mxu0 0.0
      %954 = vmatpush1.msra.mxu0 0.0
      %955 = vmatprep.subr.mxu0 0.0
      %956 = vmatpush1.msra.mxu0 0.0
      %957 = vmatprep.subr.mxu0 0.0
      %958 = vmatpush1.msra.mxu0 0.0
      %959 = vmatprep.subr.mxu0 0.0
      %960 = vmatpush1.msra.mxu0 0.0
      %961 = vmatprep.subr.mxu0 0.0
      %962 = vmatpush1.msra.mxu0 0.0
      %963 = vmatprep.subr.mxu0 0.0
      %964 = vmatpush1.msra.mxu0 0.0
      %965 = vmatprep.subr.mxu0 0.0
      %966 = vmatpush1.msra.mxu0 0.0
      %967 = vmatprep.subr.mxu0 0.0
      %968 = vmatpush1.msra.mxu0 0.0
      %969 = vmatprep.subr.mxu0 0.0
      %970 = vmatpush1.msra.mxu0 0.0
      %971 = vmatprep.subr.mxu0 0.0
      %972 = vmatpush1.msra.mxu0 0.0
      %973 = vmatprep.subr.mxu0 0.0
      %974 = vmatpush1.msra.mxu0 0.0
      %975 = vmatprep.subr.mxu0 0.0
      %976 = vmatpush1.msra.mxu0 0.0
      %977 = vmatprep.subr.mxu0 0.0
      %978 = vmatpush1.msra.mxu0 0.0
      %979 = vmatprep.subr.mxu0 0.0
      %980 = vmatpush1.msra.mxu0 0.0
      %981 = vmatprep.subr.mxu0 0.0
      %982 = vmatpush1.msra.mxu0 0.0
      %983 = vmatprep.subr.mxu0 0.0
      %984 = vmatpush1.msra.mxu0 0.0
      %985 = vmatprep.subr.mxu0 0.0
      %986 = vmatpush1.msra.mxu0 0.0
      %987 = vmatprep.subr.mxu0 0.0
      %988 = vmatpush1.msra.mxu0 0.0
      %989 = vmatprep.subr.mxu0 0.0
      %990 = vmatpush1.msra.mxu0 0.0
      %991 = vmatprep.subr.mxu0 0.0
      %992 = vmatpush1.msra.mxu0 0.0
      %993 = vmatprep.subr.mxu0 0.0
      %994 = vmatpush1.msra.mxu0 0.0
      %995 = vmatprep.subr.mxu0 0.0
      %996 = vmatpush1.msra.mxu0 0.0
      %997 = vmatprep.subr.mxu0 0.0
      %998 = vmatpush1.msra.mxu0 0.0
      %999 = vmatprep.subr.mxu0 0.0
      %1000 = vmatpush1.msra.mxu0 0.0
      %1001 = vmatprep.subr.mxu0 0.0
      %1002 = vmatpush1.msra.mxu0 0.0
      %1003 = vmatprep.subr.mxu0 0.0
      %1004 = vmatpush1.msra.mxu0 0.0
      %1005 = vmatprep.mubr.f32.mxu0 0.0
      %1006 = vmatmul.mubr.f32.gmra.mrb[0].mxu0 %v939
      %v1007 = vpop.f32.mrb[0].mxu0
      %v1008 = vadd.f32 0.0, %v1007
      %v1009 = vpop.f32.mrb[0].mxu0
      %1010 = vdwg.mxu0
      %v1011 = vstv %s291
      %v1012 = vmul.f32 %v1008, %v1011
      %v1013 = vsub.f32 %v1012, %v854
      %v1014 = vstv %s293
      %v1015 = vmul.f32 %v1014, %v1013
      %v1016 = vadd.f32 %v1008, %v1015
      %s1017 = smul.f32 %s291, 0.7310586
      %v1018 = vstv %s1017
      %v1019 = vmul.f32 %v1016, %v1018
      %1020 = vmatprep.subr.mxu0 0.0
      %1021 = vmatpush1.msra.mxu0 %v287
      %1022 = vmatprep.subr.mxu0 0.0
      %1023 = vmatpush1.msra.mxu0 %v288
      %1024 = vmatprep.subr.mxu0 0.0
      %1025 = vmatpush1.msra.mxu0 %v289
      %1026 = vmatprep.subr.mxu0 0.0
      %1027 = vmatpush1.msra.mxu0 %v290
      %1028 = vmatprep.subr.mxu0 0.0
      %1029 = vmatpush1.msra.mxu0 0.0
      %1030 = vmatprep.subr.mxu0 0.0
      %1031 = vmatpush1.msra.mxu0 0.0
      %1032 = vmatprep.subr.mxu0 0.0
      %1033 = vmatpush1.msra.mxu0 0.0
      %1034 = vmatprep.subr.mxu0 0.0
      %1035 = vmatpush1.msra.mxu0 0.0
      %1036 = vmatprep.subr.mxu0 0.0
      %1037 = vmatpush1.msra.mxu0 0.0
      %1038 = vmatprep.subr.mxu0 0.0
      %1039 = vmatpush1.msra.mxu0 0.0
      %1040 = vmatprep.subr.mxu0 0.0
      %1041 = vmatpush1.msra.mxu0 0.0
      %1042 = vmatprep.subr.mxu0 0.0
      %1043 = vmatpush1.msra.mxu0 0.0
      %1044 = vmatprep.subr.mxu0 0.0
      %1045 = vmatpush1.msra.mxu0 0.0
      %1046 = vmatprep.subr.mxu0 0.0
      %1047 = vmatpush1.msra.mxu0 0.0
      %1048 = vmatprep.subr.mxu0 0.0
      %1049 = vmatpush1.msra.mxu0 0.0
      %1050 = vmatprep.subr.mxu0 0.0
      %1051 = vmatpush1.msra.mxu0 0.0
      %1052 = vmatprep.subr.mxu0 0.0
      %1053 = vmatpush1.msra.mxu0 0.0
      %1054 = vmatprep.subr.mxu0 0.0
      %1055 = vmatpush1.msra.mxu0 0.0
      %1056 = vmatprep.subr.mxu0 0.0
      %1057 = vmatpush1.msra.mxu0 0.0
      %1058 = vmatprep.subr.mxu0 0.0
      %1059 = vmatpush1.msra.mxu0 0.0
      %1060 = vmatprep.subr.mxu0 0.0
      %1061 = vmatpush1.msra.mxu0 0.0
      %1062 = vmatprep.subr.mxu0 0.0
      %1063 = vmatpush1.msra.mxu0 0.0
      %1064 = vmatprep.subr.mxu0 0.0
      %1065 = vmatpush1.msra.mxu0 0.0
      %1066 = vmatprep.subr.mxu0 0.0
      %1067 = vmatpush1.msra.mxu0 0.0
      %1068 = vmatprep.subr.mxu0 0.0
      %1069 = vmatpush1.msra.mxu0 0.0
      %1070 = vmatprep.subr.mxu0 0.0
      %1071 = vmatpush1.msra.mxu0 0.0
      %1072 = vmatprep.subr.mxu0 0.0
      %1073 = vmatpush1.msra.mxu0 0.0
      %1074 = vmatprep.subr.mxu0 0.0
      %1075 = vmatpush1.msra.mxu0 0.0
      %1076 = vmatprep.subr.mxu0 0.0
      %1077 = vmatpush1.msra.mxu0 0.0
      %1078 = vmatprep.subr.mxu0 0.0
      %1079 = vmatpush1.msra.mxu0 0.0
      %1080 = vmatprep.subr.mxu0 0.0
      %1081 = vmatpush1.msra.mxu0 0.0
      %1082 = vmatprep.subr.mxu0 0.0
      %1083 = vmatpush1.msra.mxu0 0.0
      %1084 = vmatprep.mubr.f32.mxu0 0.0
      %1085 = vmatmul.mubr.f32.gmra.mrb[0].mxu0 %v939
      %v1086 = vpop.f32.mrb[0].mxu0
      %v1087 = vadd.f32 0.0, %v1086
      %v1088 = vpop.f32.mrb[0].mxu0
      %1089 = vdwg.mxu0
      %v1090 = vmul.f32 %v1087, %v1018
      %v1091 = vld [vmem:[#allocation21] sm:$0xff]
      %v1092 = vld [vmem:[#allocation21 + $0x8] sm:$0xff]
      %v1093 = vld [vmem:[#allocation21 + $0x10] sm:$0xff]
      %v1094 = vld [vmem:[#allocation21 + $0x18] sm:$0xff]
      %v1095 = vld [vmem:[#allocation21 + $0x20] sm:$0xff]
      %v1096 = vld [vmem:[#allocation21 + $0x28] sm:$0xff]
      %v1097 = vld [vmem:[#allocation21 + $0x30] sm:$0xff]
      %v1098 = vld [vmem:[#allocation21 + $0x38] sm:$0xff]
      %v1099 = vld [vmem:[#allocation21 + $0x40] sm:$0xff]
      %v1100 = vld [vmem:[#allocation21 + $0x48] sm:$0xff]
      %v1101 = vld [vmem:[#allocation21 + $0x50] sm:$0xff]
      %v1102 = vld [vmem:[#allocation21 + $0x58] sm:$0xff]
      %v1103 = vld [vmem:[#allocation21 + $0x60] sm:$0xff]
      %v1104 = vld [vmem:[#allocation21 + $0x68] sm:$0xff]
      %v1105 = vld [vmem:[#allocation21 + $0x70] sm:$0xff]
      %v1106 = vld [vmem:[#allocation21 + $0x78] sm:$0xff]
      %v1107 = vld [vmem:[#allocation22] sm:$0x1]
      %1108 = vmatprep.subr.mxu0 0.0
      %1109 = vmatpush1.msra.mxu0 %v1091
      %1110 = vmatprep.subr.mxu0 0.0
      %1111 = vmatpush1.msra.mxu0 %v1092
      %1112 = vmatprep.subr.mxu0 0.0
      %1113 = vmatpush1.msra.mxu0 %v1093
      %1114 = vmatprep.subr.mxu0 0.0
      %1115 = vmatpush1.msra.mxu0 %v1094
      %1116 = vmatprep.subr.mxu0 0.0
      %1117 = vmatpush1.msra.mxu0 %v1095
      %1118 = vmatprep.subr.mxu0 0.0
      %1119 = vmatpush1.msra.mxu0 %v1096
      %1120 = vmatprep.subr.mxu0 0.0
      %1121 = vmatpush1.msra.mxu0 %v1097
      %1122 = vmatprep.subr.mxu0 0.0
      %1123 = vmatpush1.msra.mxu0 %v1098
      %1124 = vmatprep.subr.mxu0 0.0
      %1125 = vmatpush1.msra.mxu0 %v1099
      %1126 = vmatprep.subr.mxu0 0.0
      %1127 = vmatpush1.msra.mxu0 %v1100
      %1128 = vmatprep.subr.mxu0 0.0
      %1129 = vmatpush1.msra.mxu0 %v1101
      %1130 = vmatprep.subr.mxu0 0.0
      %1131 = vmatpush1.msra.mxu0 %v1102
      %1132 = vmatprep.subr.mxu0 0.0
      %1133 = vmatpush1.msra.mxu0 %v1103
      %1134 = vmatprep.subr.mxu0 0.0
      %1135 = vmatpush1.msra.mxu0 %v1104
      %1136 = vmatprep.subr.mxu0 0.0
      %1137 = vmatpush1.msra.mxu0 %v1105
      %1138 = vmatprep.subr.mxu0 0.0
      %1139 = vmatpush1.msra.mxu0 %v1106
      %1140 = vmatprep.subr.mxu0 0.0
      %1141 = vmatpush1.msra.mxu0 0.0
      %1142 = vmatprep.subr.mxu0 0.0
      %1143 = vmatpush1.msra.mxu0 0.0
      %1144 = vmatprep.subr.mxu0 0.0
      %1145 = vmatpush1.msra.mxu0 0.0
      %1146 = vmatprep.subr.mxu0 0.0
      %1147 = vmatpush1.msra.mxu0 0.0
      %1148 = vmatprep.subr.mxu0 0.0
      %1149 = vmatpush1.msra.mxu0 0.0
      %1150 = vmatprep.subr.mxu0 0.0
      %1151 = vmatpush1.msra.mxu0 0.0
      %1152 = vmatprep.subr.mxu0 0.0
      %1153 = vmatpush1.msra.mxu0 0.0
      %1154 = vmatprep.subr.mxu0 0.0
      %1155 = vmatpush1.msra.mxu0 0.0
      %1156 = vmatprep.subr.mxu0 0.0
      %1157 = vmatpush1.msra.mxu0 0.0
      %1158 = vmatprep.subr.mxu0 0.0
      %1159 = vmatpush1.msra.mxu0 0.0
      %1160 = vmatprep.subr.mxu0 0.0
      %1161 = vmatpush1.msra.mxu0 0.0
      %1162 = vmatprep.subr.mxu0 0.0
      %1163 = vmatpush1.msra.mxu0 0.0
      %1164 = vmatprep.subr.mxu0 0.0
      %1165 = vmatpush1.msra.mxu0 0.0
      %1166 = vmatprep.subr.mxu0 0.0
      %1167 = vmatpush1.msra.mxu0 0.0
      %1168 = vmatprep.subr.mxu0 0.0
      %1169 = vmatpush1.msra.mxu0 0.0
      %1170 = vmatprep.subr.mxu0 0.0
      %1171 = vmatpush1.msra.mxu0 0.0
      %1172 = vmatprep.mubr.f32.mxu0 0.0
      %1173 = vmatmul.mubr.f32.gmra.mrb[0].mxu0 %v1090
      %v1174 = vpop.f32.mrb[0].mxu0
      %v1175 = vadd.f32 %v1107, %v1174
      %v1176 = vpop.f32.mrb[0].mxu0
      %1177 = vdwg.mxu0
      %v1178 = vmax.f32 %v1175, 0.0
      %v1179 = vld [vmem:[#allocation24] sm:$0xff]
      %v1180 = vld [vmem:[#allocation24 + $0x8] sm:$0xff]
      %v1181 = vld [vmem:[#allocation24 + $0x10] sm:$0xff]
      %v1182 = vld [vmem:[#allocation24 + $0x18] sm:$0xff]
      %v1183 = vld [vmem:[#allocation24 + $0x20] sm:$0xff]
      %v1184 = vld [vmem:[#allocation24 + $0x28] sm:$0xff]
      %v1185 = vld [vmem:[#allocation24 + $0x30] sm:$0xff]
      %v1186 = vld [vmem:[#allocation24 + $0x38] sm:$0xff]
      %v1187 = vld [vmem:[#allocation24 + $0x40] sm:$0xff]
      %v1188 = vld [vmem:[#allocation24 + $0x48] sm:$0xff]
      %v1189 = vld [vmem:[#allocation24 + $0x50] sm:$0xff]
      %v1190 = vld [vmem:[#allocation24 + $0x58] sm:$0xff]
      %v1191 = vld [vmem:[#allocation24 + $0x60] sm:$0xff]
      %v1192 = vld [vmem:[#allocation24 + $0x68] sm:$0xff]
      %v1193 = vld [vmem:[#allocation24 + $0x70] sm:$0xff]
      %v1194 = vld [vmem:[#allocation24 + $0x78] sm:$0xff]
      %v1195 = vld [vmem:[#allocation25] sm:$0x1]
      %1196 = vmatprep.subr.mxu0 0.0
      %1197 = vmatpush1.msra.mxu0 %v1179
      %1198 = vmatprep.subr.mxu0 0.0
      %1199 = vmatpush1.msra.mxu0 %v1180
      %1200 = vmatprep.subr.mxu0 0.0
      %1201 = vmatpush1.msra.mxu0 %v1181
      %1202 = vmatprep.subr.mxu0 0.0
      %1203 = vmatpush1.msra.mxu0 %v1182
      %1204 = vmatprep.subr.mxu0 0.0
      %1205 = vmatpush1.msra.mxu0 %v1183
      %1206 = vmatprep.subr.mxu0 0.0
      %1207 = vmatpush1.msra.mxu0 %v1184
      %1208 = vmatprep.subr.mxu0 0.0
      %1209 = vmatpush1.msra.mxu0 %v1185
      %1210 = vmatprep.subr.mxu0 0.0
      %1211 = vmatpush1.msra.mxu0 %v1186
      %1212 = vmatprep.subr.mxu0 0.0
      %1213 = vmatpush1.msra.mxu0 %v1187
      %1214 = vmatprep.subr.mxu0 0.0
      %1215 = vmatpush1.msra.mxu0 %v1188
      %1216 = vmatprep.subr.mxu0 0.0
      %1217 = vmatpush1.msra.mxu0 %v1189
      %1218 = vmatprep.subr.mxu0 0.0
      %1219 = vmatpush1.msra.mxu0 %v1190
      %1220 = vmatprep.subr.mxu0 0.0
      %1221 = vmatpush1.msra.mxu0 %v1191
      %1222 = vmatprep.subr.mxu0 0.0
      %1223 = vmatpush1.msra.mxu0 %v1192
      %1224 = vmatprep.subr.mxu0 0.0
      %1225 = vmatpush1.msra.mxu0 %v1193
      %1226 = vmatprep.subr.mxu0 0.0
      %1227 = vmatpush1.msra.mxu0 %v1194
      %1228 = vmatprep.subr.mxu0 0.0
      %1229 = vmatpush1.msra.mxu0 0.0
      %1230 = vmatprep.subr.mxu0 0.0
      %1231 = vmatpush1.msra.mxu0 0.0
      %1232 = vmatprep.subr.mxu0 0.0
      %1233 = vmatpush1.msra.mxu0 0.0
      %1234 = vmatprep.subr.mxu0 0.0
      %1235 = vmatpush1.msra.mxu0 0.0
      %1236 = vmatprep.subr.mxu0 0.0
      %1237 = vmatpush1.msra.mxu0 0.0
      %1238 = vmatprep.subr.mxu0 0.0
      %1239 = vmatpush1.msra.mxu0 0.0
      %1240 = vmatprep.subr.mxu0 0.0
      %1241 = vmatpush1.msra.mxu0 0.0
      %1242 = vmatprep.subr.mxu0 0.0
      %1243 = vmatpush1.msra.mxu0 0.0
      %1244 = vmatprep.subr.mxu0 0.0
      %1245 = vmatpush1.msra.mxu0 0.0
      %1246 = vmatprep.subr.mxu0 0.0
      %1247 = vmatpush1.msra.mxu0 0.0
      %1248 = vmatprep.subr.mxu0 0.0
      %1249 = vmatpush1.msra.mxu0 0.0
      %1250 = vmatprep.subr.mxu0 0.0
      %1251 = vmatpush1.msra.mxu0 0.0
      %1252 = vmatprep.subr.mxu0 0.0
      %1253 = vmatpush1.msra.mxu0 0.0
      %1254 = vmatprep.subr.mxu0 0.0
      %1255 = vmatpush1.msra.mxu0 0.0
      %1256 = vmatprep.subr.mxu0 0.0
      %1257 = vmatpush1.msra.mxu0 0.0
      %1258 = vmatprep.subr.mxu0 0.0
      %1259 = vmatpush1.msra.mxu0 0.0
      %1260 = vmatprep.mubr.f32.mxu0 0.0
      %1261 = vmatmul.mubr.f32.gmra.mrb[0].mxu0 %v1178
      %v1262 = vpop.f32.mrb[0].mxu0
      %v1263 = vadd.f32 %v1195, %v1262
      %v1264 = vpop.f32.mrb[0].mxu0
      %1265 = vdwg.mxu0
      %v1266 = vmax.f32 %v1263, 0.0
      %v1267 = vld [vmem:[#allocation27] sm:$0xff]
      %v1268 = vld [vmem:[#allocation27 + $0x8] sm:$0xff]
      %v1269 = vld [vmem:[#allocation27 + $0x10] sm:$0xff]
      %v1270 = vld [vmem:[#allocation27 + $0x18] sm:$0xff]
      %v1271 = vld [vmem:[#allocation27 + $0x20] sm:$0xff]
      %v1272 = vld [vmem:[#allocation27 + $0x28] sm:$0xff]
      %v1273 = vld [vmem:[#allocation27 + $0x30] sm:$0xff]
      %v1274 = vld [vmem:[#allocation27 + $0x38] sm:$0xff]
      %v1275 = vld [vmem:[#allocation27 + $0x40] sm:$0xff]
      %v1276 = vld [vmem:[#allocation27 + $0x48] sm:$0xff]
      %v1277 = vld [vmem:[#allocation27 + $0x50] sm:$0xff]
      %v1278 = vld [vmem:[#allocation27 + $0x58] sm:$0xff]
      %v1279 = vld [vmem:[#allocation27 + $0x60] sm:$0xff]
      %v1280 = vld [vmem:[#allocation27 + $0x68] sm:$0xff]
      %v1281 = vld [vmem:[#allocation27 + $0x70] sm:$0xff]
      %v1282 = vld [vmem:[#allocation27 + $0x78] sm:$0xff]
      %v1283 = vld [vmem:[#allocation28] sm:$0x1]
      %1284 = vmatprep.subr.mxu0 0.0
      %1285 = vmatpush1.msra.mxu0 %v1267
      %1286 = vmatprep.subr.mxu0 0.0
      %1287 = vmatpush1.msra.mxu0 %v1268
      %1288 = vmatprep.subr.mxu0 0.0
      %1289 = vmatpush1.msra.mxu0 %v1269
      %1290 = vmatprep.subr.mxu0 0.0
      %1291 = vmatpush1.msra.mxu0 %v1270
      %1292 = vmatprep.subr.mxu0 0.0
      %1293 = vmatpush1.msra.mxu0 %v1271
      %1294 = vmatprep.subr.mxu0 0.0
      %1295 = vmatpush1.msra.mxu0 %v1272
      %1296 = vmatprep.subr.mxu0 0.0
      %1297 = vmatpush1.msra.mxu0 %v1273
      %1298 = vmatprep.subr.mxu0 0.0
      %1299 = vmatpush1.msra.mxu0 %v1274
      %1300 = vmatprep.subr.mxu0 0.0
      %1301 = vmatpush1.msra.mxu0 %v1275
      %1302 = vmatprep.subr.mxu0 0.0
      %1303 = vmatpush1.msra.mxu0 %v1276
      %1304 = vmatprep.subr.mxu0 0.0
      %1305 = vmatpush1.msra.mxu0 %v1277
      %1306 = vmatprep.subr.mxu0 0.0
      %1307 = vmatpush1.msra.mxu0 %v1278
      %1308 = vmatprep.subr.mxu0 0.0
      %1309 = vmatpush1.msra.mxu0 %v1279
      %1310 = vmatprep.subr.mxu0 0.0
      %1311 = vmatpush1.msra.mxu0 %v1280
      %1312 = vmatprep.subr.mxu0 0.0
      %1313 = vmatpush1.msra.mxu0 %v1281
      %1314 = vmatprep.subr.mxu0 0.0
      %1315 = vmatpush1.msra.mxu0 %v1282
      %1316 = vmatprep.subr.mxu0 0.0
      %1317 = vmatpush1.msra.mxu0 0.0
      %1318 = vmatprep.subr.mxu0 0.0
      %1319 = vmatpush1.msra.mxu0 0.0
      %1320 = vmatprep.subr.mxu0 0.0
      %1321 = vmatpush1.msra.mxu0 0.0
      %1322 = vmatprep.subr.mxu0 0.0
      %1323 = vmatpush1.msra.mxu0 0.0
      %1324 = vmatprep.subr.mxu0 0.0
      %1325 = vmatpush1.msra.mxu0 0.0
      %1326 = vmatprep.subr.mxu0 0.0
      %1327 = vmatpush1.msra.mxu0 0.0
      %1328 = vmatprep.subr.mxu0 0.0
      %1329 = vmatpush1.msra.mxu0 0.0
      %1330 = vmatprep.subr.mxu0 0.0
      %1331 = vmatpush1.msra.mxu0 0.0
      %1332 = vmatprep.subr.mxu0 0.0
      %1333 = vmatpush1.msra.mxu0 0.0
      %1334 = vmatprep.subr.mxu0 0.0
      %1335 = vmatpush1.msra.mxu0 0.0
      %1336 = vmatprep.subr.mxu0 0.0
      %1337 = vmatpush1.msra.mxu0 0.0
      %1338 = vmatprep.subr.mxu0 0.0
      %1339 = vmatpush1.msra.mxu0 0.0
      %1340 = vmatprep.subr.mxu0 0.0
      %1341 = vmatpush1.msra.mxu0 0.0
      %1342 = vmatprep.subr.mxu0 0.0
      %1343 = vmatpush1.msra.mxu0 0.0
      %1344 = vmatprep.subr.mxu0 0.0
      %1345 = vmatpush1.msra.mxu0 0.0
      %1346 = vmatprep.subr.mxu0 0.0
      %1347 = vmatpush1.msra.mxu0 0.0
      %1348 = vmatprep.mubr.f32.mxu0 0.0
      %1349 = vmatmul.mubr.f32.gmra.mrb[0].mxu0 %v1266
      %v1350 = vpop.f32.mrb[0].mxu0
      %v1351 = vadd.f32 %v1283, %v1350
      %v1352 = vpop.f32.mrb[0].mxu0
      %1353 = vdwg.mxu0
      %vm1354 = vcmp.ne.f32.partialorder %v1019, %v1019
      %v1355 = vsel %vm1354, 1, 0
      %v1356 = vcvt.s32.f32 %v1355
      %vm1357 = vcmask 1040384
      %v1358 = vsel %vm1357, %v1356, -inf
      %1359 = vmax.xlane.f32.xlu0 %v1358
      %v1360 = vpop.xlane.xlu0 %1359
      %vm1361 = vcmp.ne.f32.partialorder %v1351, %v1351
      %v1362 = vsel %vm1361, 1, 0
      %v1363 = vcvt.s32.f32 %v1362
      %v1364 = vsel %vm1357, %v1363, -inf
      %1365 = vmax.xlane.f32.xlu0 %v1364
      %v1366 = vpop.xlane.xlu0 %1365
      %vm1367 = vcmp.lt.f32.partialorder %v1360, 0.5
      %v1368 = vsel %vm1367, 1, 0
      %vm1369 = vcmp.eq.s32.totalorder %v1368, 1
      %v1370 = vsel %vm1369, %v1019, %v854
      %vm1371 = vcmp.lt.f32.partialorder %v1366, 0.5
      %v1372 = vsel %vm1371, 1, 0
      %vm1373 = vcmp.eq.s32.totalorder %v1372, 1
      %v1374 = vsel %vm1373, %v1351, %v854
      %1375 = vst [vmem:[#allocation31] sm:$0x1] %v1012
      %1376 = vst [vmem:[#allocation34] sm:$0x1] %v1370
      %v1377 = vsel %vm860, %v1012, -1e+30
      %v1378 = vsel %vm1357, %v1377, -inf
      %1379 = vmax.xlane.f32.xlu0 %v1378
      %v1380 = vpop.xlane.xlu0 %1379
      %v1381 = vsub.f32 %v1377, %v1380
      %v1382 = vmul.f32 %v1381, 1.442695
      %v1383 = vpow.pop %v1382
      %v1384 = vsel %vm1357, %v1383, 0.0
      %1385 = vadd.xlane.f32.xlu0 %v1384
      %v1386 = vpop.xlane.xlu0 %1385
      %v1387 = vsub.f32 %v1012, %v1380
      %v1388 = vlog2.pop %v1386
      %v1389 = vmul.f32 %v1388, 0.6931472
      %v1390 = vsub.f32 %v1387, %v1389
      %v1391 = vsel %vm860, %v1390, 0.0
      %1392 = vst [vmem:[#allocation30] sm:$0x1] %v1391
      %v1393 = vsel %vm860, %v1370, -1e+30
      %v1394 = vsel %vm1357, %v1393, -inf
      %1395 = vmax.xlane.f32.xlu0 %v1394
      %v1396 = vpop.xlane.xlu0 %1395
      %v1397 = vsub.f32 %v1393, %v1396
      %v1398 = vmul.f32 %v1397, 1.442695
      %v1399 = vpow.pop %v1398
      %v1400 = vsel %vm1357, %v1399, 0.0
      %1401 = vadd.xlane.f32.xlu0 %v1400
      %v1402 = vpop.xlane.xlu0 %1401
      %v1403 = vsub.f32 %v1370, %v1396
      %v1404 = vlog2.pop %v1402
      %v1405 = vmul.f32 %v1404, 0.6931472
      %v1406 = vsub.f32 %v1403, %v1405
      %v1407 = vsel %vm860, %v1406, 0.0
      %1408 = vst [vmem:[#allocation33] sm:$0x1] %v1407
      %v1409 = vsel %vm860, %v1374, -1e+30
      %v1410 = vsel %vm1357, %v1409, -inf
      %1411 = vmax.xlane.f32.xlu0 %v1410
      %v1412 = vpop.xlane.xlu0 %1411
      %v1413 = vsub.f32 %v1409, %v1412
      %v1414 = vmul.f32 %v1413, 1.442695
      %v1415 = vpow.pop %v1414
      %v1416 = vsel %vm1357, %v1415, 0.0
      %1417 = vadd.xlane.f32.xlu0 %v1416
      %v1418 = vpop.xlane.xlu0 %1417
      %v1419 = vsub.f32 %v1374, %v1412
      %v1420 = vlog2.pop %v1418
      %v1421 = vmul.f32 %v1420, 0.6931472
      %v1422 = vsub.f32 %v1419, %v1421
      %v1423 = vsel %vm860, %v1422, 0.0
      %1424 = vst [vmem:[#allocation36] sm:$0x1] %v1423
    $region141: #{_gnn_forward_jit.1} parent=1 // pred_fallthru
      _
    // Predicated region
    $region142: #{_gnn_forward_jit.1} parent=1 // pred_check
      _
    $region143: #{_gnn_forward_jit.1} parent=1 // pred_check_branch
      %1426 = sbr.rel (0) target = $region145
    $region144: #{_gnn_forward_jit.1} parent=1 // pred_region
      %s1428 = ssub.s32 512, 512
      %1429 = vsyncadd [#allocation4], %s1428
      %s1430 = sshll.u32 [#allocation30], 4
      %s1431 = int_to_ptr.vmem [resolvable:$true] %s1430
      %1436 = dma.vmem_to_hbm [thread:$0]  %s1431, 512, %s17, [#allocation4], 128, 128, 8
    $region145: #{_gnn_forward_jit.1} parent=1 // pred_fallthru
      _
    // Predicated region
    $region146: #{_gnn_forward_jit.1} parent=1 // pred_check
      _
    $region147: #{_gnn_forward_jit.1} parent=1 // pred_check_branch
      %1438 = sbr.rel (0) target = $region149
    $region148: #{_gnn_forward_jit.1} parent=1 // pred_region
      %s1440 = ssub.s32 512, 512
      %1441 = vsyncadd [#allocation32], %s1440
      %s1442 = sshll.u32 [#allocation31], 4
      %s1443 = int_to_ptr.vmem [resolvable:$true] %s1442
      %1448 = dma.vmem_to_hbm [thread:$0]  %s1443, 512, %s18, [#allocation32], 128, 128, 8
    $region149: #{_gnn_forward_jit.1} parent=1 // pred_fallthru
      _
    // Predicated region
    $region150: #{_gnn_forward_jit.1} parent=1 // pred_check
      _
    $region151: #{_gnn_forward_jit.1} parent=1 // pred_check_branch
      %1450 = sbr.rel (0) target = $region153
    $region152: #{_gnn_forward_jit.1} parent=1 // pred_region
      %s1452 = ssub.s32 512, 512
      %1453 = vsyncadd [#allocation32], %s1452
      %s1454 = sshll.u32 [#allocation33], 4
      %s1455 = int_to_ptr.vmem [resolvable:$true] %s1454
      %1460 = dma.vmem_to_hbm [thread:$0]  %s1455, 512, %s19, [#allocation32], 128, 128, 8
    $region153: #{_gnn_forward_jit.1} parent=1 // pred_fallthru
      _
    // Predicated region
    $region154: #{_gnn_forward_jit.1} parent=1 // pred_check
      _
    $region155: #{_gnn_forward_jit.1} parent=1 // pred_check_branch
      %1462 = sbr.rel (0) target = $region157
    $region156: #{_gnn_forward_jit.1} parent=1 // pred_region
      %s1464 = ssub.s32 512, 512
      %1465 = vsyncadd [#allocation35], %s1464
      %s1466 = sshll.u32 [#allocation34], 4
      %s1467 = int_to_ptr.vmem [resolvable:$true] %s1466
      %1472 = dma.vmem_to_hbm [thread:$0]  %s1467, 512, %s20, [#allocation35], 128, 128, 8
    $region157: #{_gnn_forward_jit.1} parent=1 // pred_fallthru
      _
    // Predicated region
    $region158: #{_gnn_forward_jit.1} parent=1 // pred_check
      _
    $region159: #{_gnn_forward_jit.1} parent=1 // pred_check_branch
      %1474 = sbr.rel (0) target = $region161
    $region160: #{_gnn_forward_jit.1} parent=1 // pred_region
      %s1476 = ssub.s32 512, 512
      %1477 = vsyncadd [#allocation35], %s1476
      %s1478 = sshll.u32 [#allocation36], 4
      %s1479 = int_to_ptr.vmem [resolvable:$true] %s1478
      %1484 = dma.vmem_to_hbm [thread:$0]  %s1479, 512, %s21, [#allocation35], 128, 128, 8
    $region161: #{_gnn_forward_jit.1} parent=1 // pred_fallthru
      _
    // Predicated region
    $region162: #{_gnn_forward_jit.1} parent=1 // pred_check
      _
    $region163: #{_gnn_forward_jit.1} parent=1 // pred_check_branch
      %1486 = sbr.rel (0) target = $region165
    $region164: #{_gnn_forward_jit.1} parent=1 // pred_region
      %1487 = dma.done [#allocation4], 512
    $region165: #{_gnn_forward_jit.1} parent=1 // pred_fallthru
      _
    // Predicated region
    $region166: #{_gnn_forward_jit.1} parent=1 // pred_check
      _
    $region167: #{_gnn_forward_jit.1} parent=1 // pred_check_branch
      %1489 = sbr.rel (0) target = $region169
    $region168: #{_gnn_forward_jit.1} parent=1 // pred_region
      %1490 = dma.done [#allocation32], 512
    $region169: #{_gnn_forward_jit.1} parent=1 // pred_fallthru
      _
    // Predicated region
    $region170: #{_gnn_forward_jit.1} parent=1 // pred_check
      _
    $region171: #{_gnn_forward_jit.1} parent=1 // pred_check_branch
      %1492 = sbr.rel (0) target = $region173
    $region172: #{_gnn_forward_jit.1} parent=1 // pred_region
      %1493 = dma.done [#allocation32], 512
    $region173: #{_gnn_forward_jit.1} parent=1 // pred_fallthru
      _
    // Predicated region
    $region174: #{_gnn_forward_jit.1} parent=1 // pred_check
      _
    $region175: #{_gnn_forward_jit.1} parent=1 // pred_check_branch
      %1495 = sbr.rel (0) target = $region177
    $region176: #{_gnn_forward_jit.1} parent=1 // pred_region
      %1496 = dma.done [#allocation35], 512
    $region177: #{_gnn_forward_jit.1} parent=1 // pred_fallthru
      _
    // Predicated region
    $region178: #{_gnn_forward_jit.1} parent=1 // pred_check
      _
    $region179: #{_gnn_forward_jit.1} parent=1 // pred_check_branch
      %1498 = sbr.rel (0) target = $region181
    $region180: #{_gnn_forward_jit.1} parent=1 // pred_region
      %1499 = dma.done [#allocation35], 512
    $region181: #{_gnn_forward_jit.1} parent=1 // pred_fallthru
      _
    %1500 = vsyncpa [#allocation3], 1
    %1501 = vsyncpa [#allocation8], 1
    %1502 = vsyncpa [#allocation11], 1
    %1503 = vsyncpa [#allocation14], 1
    %1504 = vsyncpa [#allocation17], 1
    %1505 = vsyncpa [#allocation20], 1
    %1506 = vsyncpa [#allocation23], 1
    %1507 = vsyncpa [#allocation26], 1
    %1508 = vsyncpa [#allocation29], 1
    %1509 = vsyncpa [#allocation4], 1
    %1510 = vsyncpa [#allocation32], 1
    %1511 = vsyncpa [#allocation35], 1
    %1512 = vsyncpa [#allocation5], 1

</llo_original>
